<compile_context>
chip_gen: v7x
topology: tpu7x:2x2x1
jax: 0.10.0
libtpu: 0.0.40
codegen_flags: <defaults>
</compile_context>

<pallas_src>
import functools
import math

import jax
import jax.numpy as jnp
from jax import lax
from jax.experimental import pallas as pl
from jax.experimental.pallas import tpu as pltpu


_NEG_BIG = -1e30  # effectively -inf for masked (padded) class columns
_VMEM_LIMIT = 48 * 1024 * 1024  # <= v7x cap per review; fine on v5e/v6e


def _round_up(x, m):
    return (x + m - 1) // m * m


def _cdiv(a, b):
    return (a + b - 1) // b


def _dropout_mask(key, shape, rate):
    """Inverted-dropout keep mask, already scaled by 1/(1-p)."""
    if rate <= 0.0:
        return jnp.ones(shape, jnp.float32)
    keep = jax.random.bernoulli(key, 1.0 - rate, shape)
    return keep.astype(jnp.float32) / (1.0 - rate)


def _row_normalize_f32(x):
    x = x.astype(jnp.float32)
    return x * lax.rsqrt(jnp.maximum(jnp.sum(x * x, axis=1, keepdims=True),
                                     1e-24))


# ---------------------------------------------------------------------------
# Training kernel: (num_splits, tiles_per_split) grid, fused in-kernel weight
# row-normalization, online log-sum-exp per split.
# ---------------------------------------------------------------------------
def _arcface_train_kernel(xd_ref, tgt_ref, ctm_ref, ft_ref, t_ref, w_ref,
                          m_out, l_out, m_sc, l_sc, *,
                          scale, num_classes, class_tile, tiles_per_split,
                          need_col_mask):
    j = pl.program_id(1)

    @pl.when(j == 0)
    def _init():
        m_sc[...] = jnp.full(m_sc.shape, _NEG_BIG, jnp.float32)
        l_sc[...] = jnp.zeros(l_sc.shape, jnp.float32)

    # Fused F.normalize(self.linear, dim=1) on the raw f32 weight tile
    # streamed from HBM -> bf16 MXU operand (halves weight HBM traffic).
    w = w_ref[...].astype(jnp.float32)
    inv = lax.rsqrt(jnp.maximum(jnp.sum(w * w, axis=1, keepdims=True), 1e-24))
    wn = (w * inv).astype(jnp.bfloat16)

    # cos_theta tile: contract dim 1 of both operands (no transpose).
    cos = lax.dot_general(xd_ref[...], wn,
                          dimension_numbers=(((1,), (1,)), ((), ())),
                          preferred_element_type=jnp.float32)
    cos = jnp.clip(cos, -1.0, 1.0)                       # (Bp, class_tile)

    g_tile = pl.program_id(0) * tiles_per_split + j
    cls = g_tile * class_tile + lax.broadcasted_iota(jnp.int32, cos.shape, 1)
    onehot = cls == tgt_ref[...]                         # padded rows use -1

    # hard-example reweighting + scatter of the margin-adjusted target logit
    t_new = t_ref[...]                                   # (1, 1), broadcasts
    mod = jnp.where(cos > ctm_ref[...], cos * (t_new + cos), cos)
    mod = jnp.where(onehot, ft_ref[...], mod)
    logits = mod * scale
    if need_col_mask:
        # Only emitted when C is not tile-aligned (ragged / padded tiles).
        logits = jnp.where(cls < num_classes, logits, _NEG_BIG)

    # online log-sum-exp across this split's class tiles
    m_prev = m_sc[...]
    m_new = jnp.maximum(m_prev, jnp.max(logits, axis=1, keepdims=True))
    l_sc[...] = (jnp.exp(m_prev - m_new) * l_sc[...]
                 + jnp.sum(jnp.exp(logits - m_new), axis=1, keepdims=True))
    m_sc[...] = m_new

    @pl.when(j == tiles_per_split - 1)
    def _finalize():
        m_out[...] = m_sc[...]
        l_out[...] = l_sc[...]


def arcface_loss_train(features, weight, targets, t_buf, dropout_key, *,
                       scale=30.0, margin=0.3, dropout_rate=0.2,
                       weight_loss=1.0, class_tile=512, num_splits=2):
    """Training forward. Returns (scalar loss, updated `t` buffer of shape (1,))."""
    assert 0.0 <= dropout_rate < 1.0, "dropout_rate must be in [0, 1)"
    B, D = features.shape
    C = weight.shape[0]
    Bp = _round_up(B, 16)                         # bf16 sublane packing

    n_tiles = _cdiv(C, class_tile)
    num_splits = max(1, min(num_splits, n_tiles))
    tiles_per_split = _cdiv(n_tiles, num_splits)
    n_tiles_pad = tiles_per_split * num_splits
    need_col_mask = (n_tiles_pad * class_tile) != C

    cos_m = math.cos(margin)
    sin_m = math.sin(margin)
    threshold = math.cos(math.pi - margin)
    mm = math.sin(math.pi - margin) * margin

    # --- O(B*D) prep, done once wrapper-side -------------------------------
    # F.normalize(features, dim=1) + inverted dropout, fused into one bf16
    # resident operand (review: drops two f32 (Bp,D) inputs + xd scratch).
    mask = _dropout_mask(dropout_key, (B, D), dropout_rate)
    xd = (_row_normalize_f32(features) * mask).astype(jnp.bfloat16)   # (B, D)

    # target_logit / cos(theta+m) / final target logit / `t` update from the
    # B gathered (and row-normalized) target weight rows.
    wt = _row_normalize_f32(
        jnp.take(weight.astype(jnp.float32), targets.astype(jnp.int32),
                 axis=0)).astype(jnp.bfloat16)                        # (B, D)
    tl = jnp.clip(jnp.sum(xd.astype(jnp.float32) * wt.astype(jnp.float32),
                          axis=1, keepdims=True), -1.0, 1.0)          # (B, 1)
    sin_t = jnp.sqrt(jnp.maximum(1.0 - tl * tl, 0.0))
    ctm = tl * cos_m - sin_t * sin_m
    ft = jnp.where(tl > threshold, ctm, tl - mm)
    t_new = jnp.mean(tl) * 0.01 + 0.99 * jnp.reshape(
        t_buf.astype(jnp.float32), ())

    # pad the tiny per-example operands to Bp (padded targets = -1 -> no hits)
    xd_p = jnp.pad(xd, ((0, Bp - B), (0, 0)))
    tgt_p = jnp.pad(targets.astype(jnp.int32), (0, Bp - B),
                    constant_values=-1).reshape(Bp, 1)
    ctm_p = jnp.pad(ctm, ((0, Bp - B), (0, 0)))
    ft_p = jnp.pad(ft, ((0, Bp - B), (0, 0)))
    t_in = jnp.reshape(t_new, (1, 1))

    kern = functools.partial(
        _arcface_train_kernel, scale=float(scale), num_classes=C,
        class_tile=class_tile, tiles_per_split=tiles_per_split,
        need_col_mask=need_col_mask)

    last_blk = n_tiles - 1

    def w_map(s, j):
        # Clamp so the DMA never targets a fully out-of-range block; padded
        # tiles are neutralized by the in-kernel column mask.
        return (jnp.minimum(s * tiles_per_split + j, last_blk), 0)

    m_parts, l_parts = pl.pallas_call(
        kern,
        grid=(num_splits, tiles_per_split),
        in_specs=[
            pl.BlockSpec((Bp, D), lambda s, j: (0, 0)),           # xd (bf16)
            pl.BlockSpec((Bp, 1), lambda s, j: (0, 0)),           # targets
            pl.BlockSpec((Bp, 1), lambda s, j: (0, 0)),           # cos(theta+m)
            pl.BlockSpec((Bp, 1), lambda s, j: (0, 0)),           # final target logit
            pl.BlockSpec((1, 1), lambda s, j: (0, 0)),            # updated t
            pl.BlockSpec((class_tile, D), w_map),                 # raw f32 weight tile
        ],
        out_specs=(pl.BlockSpec((None, Bp, 1), lambda s, j: (s, 0, 0)),
                   pl.BlockSpec((None, Bp, 1), lambda s, j: (s, 0, 0))),
        out_shape=(jax.ShapeDtypeStruct((num_splits, Bp, 1), jnp.float32),
                   jax.ShapeDtypeStruct((num_splits, Bp, 1), jnp.float32)),
        scratch_shapes=[pltpu.VMEM((Bp, 1), jnp.float32),   # running max (f32!)
                        pltpu.VMEM((Bp, 1), jnp.float32)],  # running sum-exp
        compiler_params=pltpu.CompilerParams(
            dimension_semantics=("parallel", "arbitrary"),
            vmem_limit_bytes=_VMEM_LIMIT),
    )(xd_p, tgt_p, ctm_p, ft_p, t_in, weight.astype(jnp.float32))

    # Tiny epilogue: merge per-split partial LSEs and reduce the loss.
    m_parts = m_parts[:, :B, 0]                            # (S, B)
    l_parts = l_parts[:, :B, 0]
    m = jnp.max(m_parts, axis=0)                           # (B,)
    l = jnp.sum(jnp.exp(m_parts - m[None, :]) * l_parts, axis=0)
    lse = m + jnp.log(l)
    loss = jnp.mean(lse - ft[:, 0] * scale) * weight_loss
    return loss, jnp.reshape(t_new, (1,))


# ---------------------------------------------------------------------------
# Weight row normalization for eval (amortizes over batch tiles).
# No wrapper-side pad of the f32 input; padded output rows are zeroed.
# ---------------------------------------------------------------------------
def _normalize_rows_kernel(w_ref, out_ref, *, num_rows, row_tile, mask_rows):
    w = w_ref[...].astype(jnp.float32)
    inv = lax.rsqrt(jnp.maximum(jnp.sum(w * w, axis=1, keepdims=True), 1e-24))
    wn = w * inv
    if mask_rows:
        r = (pl.program_id(0) * row_tile
             + lax.broadcasted_iota(jnp.int32, (w.shape[0], 1), 0))
        wn = jnp.where(r < num_rows, wn, 0.0)
    out_ref[...] = wn.astype(out_ref.dtype)


def _normalized_weight_bf16(weight, row_tile):
    C, D = weight.shape
    n_blocks = _cdiv(C, row_tile)
    Cp = n_blocks * row_tile
    return pl.pallas_call(
        functools.partial(_normalize_rows_kernel, num_rows=C,
                          row_tile=row_tile, mask_rows=(Cp != C)),
        grid=(n_blocks,),
        in_specs=[pl.BlockSpec((row_tile, D), lambda j: (j, 0))],
        out_specs=pl.BlockSpec((row_tile, D), lambda j: (j, 0)),
        out_shape=jax.ShapeDtypeStruct((Cp, D), jnp.bfloat16),
        compiler_params=pltpu.CompilerParams(
            dimension_semantics=("parallel",),
            vmem_limit_bytes=_VMEM_LIMIT),
    )(weight.astype(jnp.float32))


# ---------------------------------------------------------------------------
# Eval kernel: fully parallel (batch, class) grid, lane-dense output tiles.
# Feature normalization is hoisted to a tiny wrapper pre-pass so there is no
# cross-tile scratch dependency (enables megacore on the class axis too).
# ---------------------------------------------------------------------------
def _arcface_eval_kernel(x_ref, wn_ref, out_ref, *, scale):
    cos = lax.dot_general(x_ref[...], wn_ref[...],
                          dimension_numbers=(((1,), (1,)), ((), ())),
                          preferred_element_type=jnp.float32)
    # TODO(synk): emit bf16 here if downstream accepts it (halves output bytes).
    out_ref[...] = jnp.clip(cos, -1.0, 1.0) * scale


def arcface_logits_eval(features, weight, *, scale=30.0, class_tile=512,
                        batch_tile=256):
    """Eval forward: returns (B, C) scaled cosine logits."""
    B, D = features.shape
    C = weight.shape[0]
    batch_tile = min(batch_tile, _round_up(B, 16))
    Bp = _round_up(B, batch_tile)

    wn = _normalized_weight_bf16(weight, class_tile)        # (Cp, D) bf16
    Cp = wn.shape[0]

    xn = _row_normalize_f32(features).astype(jnp.bfloat16)
    x_p = jnp.pad(xn, ((0, Bp - B), (0, 0)))

    out = pl.pallas_call(
        functools.partial(_arcface_eval_kernel, scale=float(scale)),
        grid=(Bp // batch_tile, Cp // class_tile),
        in_specs=[pl.BlockSpec((batch_tile, D), lambda ib, jc: (ib, 0)),
                  pl.BlockSpec((class_tile, D), lambda ib, jc: (jc, 0))],
        out_specs=pl.BlockSpec((batch_tile, class_tile),
                               lambda ib, jc: (ib, jc)),
        out_shape=jax.ShapeDtypeStruct((Bp, Cp), jnp.float32),
        compiler_params=pltpu.CompilerParams(
            dimension_semantics=("parallel", "parallel"),
            vmem_limit_bytes=_VMEM_LIMIT),
    )(x_p, wn)
    return out[:B, :C]


# ---------------------------------------------------------------------------
# Pure-JAX references (mimic the kernel's bf16 matmul / rsqrt numerics).
# ---------------------------------------------------------------------------
def _reference_train(features, weight, targets, t_buf, mask, *,
                     scale, margin, weight_loss):
    cos_m, sin_m = math.cos(margin), math.sin(margin)
    threshold = math.cos(math.pi - margin)
    mm = math.sin(math.pi - margin) * margin

    xd = (_row_normalize_f32(features) * mask).astype(jnp.bfloat16)
    wn = _row_normalize_f32(weight).astype(jnp.bfloat16)
    cos = jnp.clip(lax.dot_general(xd, wn, (((1,), (1,)), ((), ())),
                                   preferred_element_type=jnp.float32),
                   -1.0, 1.0)
    wt = jnp.take(wn, targets, axis=0).astype(jnp.float32)
    tl = jnp.clip(jnp.sum(xd.astype(jnp.float32) * wt, axis=1, keepdims=True),
                  -1.0, 1.0)
    sin_t = jnp.sqrt(jnp.maximum(1.0 - tl * tl, 0.0))
    ctm = tl * cos_m - sin_t * sin_m
    ft = jnp.where(tl > threshold, ctm, tl - mm)
    t_new = jnp.mean(tl) * 0.01 + 0.99 * jnp.reshape(t_buf, ())
    mod = jnp.where(cos > ctm, cos * (t_new + cos), cos)
    onehot = targets[:, None] == jnp.arange(cos.shape[1])[None, :]
    mod = jnp.where(onehot, ft, mod)
    logits = mod * scale
    lse = jax.scipy.special.logsumexp(logits, axis=1, keepdims=True)
    loss = jnp.mean(lse - ft * scale) * weight_loss
    return loss, jnp.reshape(t_new, (1,))


def _reference_eval(features, weight, *, scale):
    xn = _row_normalize_f32(features).astype(jnp.bfloat16)
    wn = _row_normalize_f32(weight).astype(jnp.bfloat16)
    cos = jnp.clip(lax.dot_general(xn, wn, (((1,), (1,)), ((), ())),
                                   preferred_element_type=jnp.float32),
                   -1.0, 1.0)
    return cos * scale


if __name__ == "__main__":
    # Small shapes consistent with the module; C=1500 with class_tile=512
    # exercises multiple class tiles, the 2-way split and the ragged last tile.
    B, D, C = 8, 256, 1500
    scale, margin, dropout_rate, weight_loss = 30.0, 0.3, 0.2, 1.0

    root = jax.random.PRNGKey(0)
    kf, kw, kt, kd = jax.random.split(root, 4)
    features = jax.random.normal(kf, (B, D), dtype=jnp.float32)
    bound = math.sqrt(3.0 / D)          # kaiming_uniform_(a=sqrt(1)) on (C, D)
    weight = jax.random.uniform(kw, (C, D), minval=-bound, maxval=bound,
                                dtype=jnp.float32)
    targets = jax.random.randint(kt, (B,), 0, C, dtype=jnp.int32)
    t_buf = jnp.zeros((1,), dtype=jnp.float32)   # register_buffer('t', zeros(1))

    loss, t_new = arcface_loss_train(features, weight, targets, t_buf, kd,
                                     scale=scale, margin=margin,
                                     dropout_rate=dropout_rate,
                                     weight_loss=weight_loss)
    logits = arcface_logits_eval(features, weight, scale=scale)
    jax.block_until_ready((loss, t_new, logits))

    # Verify against a pure-JAX re-implementation of the same math.
    mask = _dropout_mask(kd, (B, D), dropout_rate)
    loss_ref, t_ref = _reference_train(features, weight, targets, t_buf, mask,
                                       scale=scale, margin=margin,
                                       weight_loss=weight_loss)
    logits_ref = _reference_eval(features, weight, scale=scale)

    assert logits.shape == (B, C)
    assert jnp.allclose(logits, logits_ref, atol=2e-2, rtol=1e-3), \
        f"eval mismatch: {jnp.max(jnp.abs(logits - logits_ref))}"
    assert bool(jnp.isfinite(loss)) and bool(jnp.all(jnp.isfinite(t_new)))
    assert jnp.allclose(loss, loss_ref, atol=5e-3, rtol=1e-3), \
        f"loss mismatch: {loss} vs {loss_ref}"
    assert jnp.allclose(t_new, t_ref, atol=1e-4, rtol=1e-4), \
        f"t mismatch: {t_new} vs {t_ref}"
    print("KERNEL_OK")
</pallas_src>

<mosaic_0001>
module attributes {stable_mosaic.version = 11 : i64} {
  func.func @_arcface_train_kernel(%arg0: i32, %arg1: i32, %arg2: memref<16x256xbf16, #tpu.memory_space<vmem>>, %arg3: memref<16x1xi32, #tpu.memory_space<vmem>>, %arg4: memref<16x1xf32, #tpu.memory_space<vmem>>, %arg5: memref<16x1xf32, #tpu.memory_space<vmem>>, %arg6: memref<1x1xf32, #tpu.memory_space<vmem>>, %arg7: memref<512x256xf32, #tpu.memory_space<vmem>>, %arg8: memref<1x16x1xf32, #tpu.memory_space<vmem>>, %arg9: memref<1x16x1xf32, #tpu.memory_space<vmem>>, %arg10: memref<16x1xf32, #tpu.memory_space<vmem>>, %arg11: memref<16x1xf32, #tpu.memory_space<vmem>>) attributes {dimension_semantics = [#tpu.dimension_semantics<parallel>, #tpu.dimension_semantics<arbitrary>], iteration_bounds = array<i64: 2, 2>, scalar_prefetch = 0 : i64, scratch_operands = 2 : i64, tpu.core_type = #tpu.core_type<tc>, window_params = [{pipeline_mode = #tpu.pipeline_mode<synchronous>, transform_indices = @transform_0, window_bounds = array<i64: 16, 256>}, {pipeline_mode = #tpu.pipeline_mode<synchronous>, transform_indices = @transform_1, window_bounds = array<i64: 16, 1>}, {pipeline_mode = #tpu.pipeline_mode<synchronous>, transform_indices = @transform_2, window_bounds = array<i64: 16, 1>}, {pipeline_mode = #tpu.pipeline_mode<synchronous>, transform_indices = @transform_3, window_bounds = array<i64: 16, 1>}, {pipeline_mode = #tpu.pipeline_mode<synchronous>, transform_indices = @transform_4, window_bounds = array<i64: 1, 1>}, {transform_indices = @transform_5, window_bounds = array<i64: 512, 256>}, {transform_indices = @transform_6, window_bounds = array<i64: 1, 16, 1>}, {transform_indices = @transform_7, window_bounds = array<i64: 1, 16, 1>}]} {
    %c0_i32 = arith.constant 0 : i32
    %0 = arith.cmpi eq, %arg1, %c0_i32 : i32
    %1 = arith.extui %0 : i1 to i32
    %c0_i32_0 = arith.constant 0 : i32
    %2 = arith.cmpi ne, %1, %c0_i32_0 : i32
    scf.if %2 {
      %cst_29 = arith.constant -1.000000e+30 : f32
      %65 = vector.broadcast %cst_29 : f32 to vector<16x1xf32>
      %c0_30 = arith.constant 0 : index
      %c0_31 = arith.constant 0 : index
      %66 = vector.load %arg10[%c0_30, %c0_31] : memref<16x1xf32, #tpu.memory_space<vmem>>, vector<16x1xf32>
      tpu.vector_store %arg10[%c0_30, %c0_31], %65 {strides = array<i32>} : memref<16x1xf32, #tpu.memory_space<vmem>>, vector<16x1xf32>,
      %cst_32 = arith.constant 0.000000e+00 : f32
      %67 = vector.broadcast %cst_32 : f32 to vector<16x1xf32>
      %c0_33 = arith.constant 0 : index
      %c0_34 = arith.constant 0 : index
      %68 = vector.load %arg11[%c0_33, %c0_34] : memref<16x1xf32, #tpu.memory_space<vmem>>, vector<16x1xf32>
      tpu.vector_store %arg11[%c0_33, %c0_34], %67 {strides = array<i32>} : memref<16x1xf32, #tpu.memory_space<vmem>>, vector<16x1xf32>,
    } else {
    }
    %c0 = arith.constant 0 : index
    %c0_1 = arith.constant 0 : index
    %3 = vector.load %arg7[%c0, %c0_1] : memref<512x256xf32, #tpu.memory_space<vmem>>, vector<512x256xf32>
    %4 = arith.mulf %3, %3 : vector<512x256xf32>
    %cst = arith.constant dense<0.000000e+00> : vector<512xf32>
    %5 = vector.multi_reduction <add>, %4, %cst [1] : vector<512x256xf32> to vector<512xf32>
    %6 = vector.shape_cast %5 : vector<512xf32> to vector<512x1xf32>
    %cst_2 = arith.constant 1.000000e-24 : f32
    %7 = vector.broadcast %cst_2 : f32 to vector<512x1xf32>
    %8 = arith.maximumf %6, %7 : vector<512x1xf32>
    %9 = math.rsqrt %8 : vector<512x1xf32>
    %10 = vector.broadcast %9 : vector<512x1xf32> to vector<512x256xf32>
    %11 = arith.mulf %3, %10 : vector<512x256xf32>
    %12 = arith.truncf %11 : vector<512x256xf32> to vector<512x256xbf16>
    %c0_3 = arith.constant 0 : index
    %c0_4 = arith.constant 0 : index
    %13 = vector.load %arg2[%c0_3, %c0_4] : memref<16x256xbf16, #tpu.memory_space<vmem>>, vector<16x256xbf16>
    %cst_5 = arith.constant dense<0.000000e+00> : vector<16x512xf32>
    %14 = tpu.matmul %13, %12, %cst_5 {dimension_numbers = #tpu.dot_dimension_numbers<[1], [1], [0], [0], [0, 0, 1, 0], [], []>} : vector<16x256xbf16>, vector<512x256xbf16>, vector<16x512xf32> -> vector<16x512xf32>
    %cst_6 = arith.constant -1.000000e+00 : f32
    %cst_7 = arith.constant 1.000000e+00 : f32
    %15 = vector.broadcast %cst_6 : f32 to vector<16x512xf32>
    %16 = arith.maximumf %15, %14 : vector<16x512xf32>
    %17 = vector.broadcast %cst_7 : f32 to vector<16x512xf32>
    %18 = arith.minimumf %17, %16 : vector<16x512xf32>
    %c2_i32 = arith.constant 2 : i32
    %19 = arith.muli %arg0, %c2_i32 : i32
    %20 = arith.addi %19, %arg1 : i32
    %c512_i32 = arith.constant 512 : i32
    %21 = arith.muli %20, %c512_i32 : i32
    %22 = tpu.iota {dimensions = array<i32: 1>} : vector<16x512xi32>
    %23 = vector.broadcast %21 : i32 to vector<16x512xi32>
    %24 = arith.addi %23, %22 : vector<16x512xi32>
    %c0_8 = arith.constant 0 : index
    %c0_9 = arith.constant 0 : index
    %25 = vector.load %arg3[%c0_8, %c0_9] : memref<16x1xi32, #tpu.memory_space<vmem>>, vector<16x1xi32>
    %26 = vector.broadcast %25 : vector<16x1xi32> to vector<16x512xi32>
    %27 = arith.cmpi eq, %24, %26 : vector<16x512xi32>
    %c0_10 = arith.constant 0 : index
    %c0_11 = arith.constant 0 : index
    %28 = vector.load %arg6[%c0_10, %c0_11] : memref<1x1xf32, #tpu.memory_space<vmem>>, vector<1x1xf32>
    %c0_12 = arith.constant 0 : index
    %c0_13 = arith.constant 0 : index
    %29 = vector.load %arg4[%c0_12, %c0_13] : memref<16x1xf32, #tpu.memory_space<vmem>>, vector<16x1xf32>
    %30 = vector.broadcast %29 : vector<16x1xf32> to vector<16x512xf32>
    %31 = arith.cmpf ogt, %18, %30 : vector<16x512xf32>
    %32 = vector.broadcast %28 : vector<1x1xf32> to vector<16x512xf32>
    %33 = arith.addf %32, %18 : vector<16x512xf32>
    %34 = arith.mulf %18, %33 : vector<16x512xf32>
    %35 = arith.select %31, %34, %18 : vector<16x512xi1>, vector<16x512xf32>
    %c0_14 = arith.constant 0 : index
    %c0_15 = arith.constant 0 : index
    %36 = vector.load %arg5[%c0_14, %c0_15] : memref<16x1xf32, #tpu.memory_space<vmem>>, vector<16x1xf32>
    %37 = vector.shape_cast %36 : vector<16x1xf32> to vector<16x1xf32>
    %38 = vector.broadcast %37 : vector<16x1xf32> to vector<16x512xf32>
    %39 = arith.select %27, %38, %35 : vector<16x512xi1>, vector<16x512xf32>
    %cst_16 = arith.constant 3.000000e+01 : f32
    %40 = vector.broadcast %cst_16 : f32 to vector<16x512xf32>
    %41 = arith.mulf %39, %40 : vector<16x512xf32>
    %c1500_i32 = arith.constant 1500 : i32
    %42 = vector.broadcast %c1500_i32 : i32 to vector<16x512xi32>
    %43 = arith.cmpi slt, %24, %42 : vector<16x512xi32>
    %cst_17 = arith.constant -1.000000e+30 : f32
    %44 = vector.broadcast %cst_17 : f32 to vector<16x512xf32>
    %45 = arith.select %43, %41, %44 : vector<16x512xi1>, vector<16x512xf32>
    %c0_18 = arith.constant 0 : index
    %c0_19 = arith.constant 0 : index
    %46 = vector.load %arg10[%c0_18, %c0_19] : memref<16x1xf32, #tpu.memory_space<vmem>>, vector<16x1xf32>
    %cst_20 = arith.constant dense<0xFF800000> : vector<16xf32>
    %47 = vector.multi_reduction <maximumf>, %45, %cst_20 [1] : vector<16x512xf32> to vector<16xf32>
    %48 = vector.shape_cast %47 : vector<16xf32> to vector<16x1xf32>
    %49 = arith.maximumf %46, %48 : vector<16x1xf32>
    %50 = arith.subf %46, %49 : vector<16x1xf32>
    %51 = math.exp %50 : vector<16x1xf32>
    %c0_21 = arith.constant 0 : index
    %c0_22 = arith.constant 0 : index
    %52 = vector.load %arg11[%c0_21, %c0_22] : memref<16x1xf32, #tpu.memory_space<vmem>>, vector<16x1xf32>
    %53 = arith.mulf %51, %52 : vector<16x1xf32>
    %54 = vector.broadcast %49 : vector<16x1xf32> to vector<16x512xf32>
    %55 = arith.subf %45, %54 : vector<16x512xf32>
    %56 = math.exp %55 : vector<16x512xf32>
    %cst_23 = arith.constant dense<0.000000e+00> : vector<16xf32>
    %57 = vector.multi_reduction <add>, %56, %cst_23 [1] : vector<16x512xf32> to vector<16xf32>
    %58 = vector.shape_cast %57 : vector<16xf32> to vector<16x1xf32>
    %59 = arith.addf %53, %58 : vector<16x1xf32>
    %c0_24 = arith.constant 0 : index
    %c0_25 = arith.constant 0 : index
    %60 = vector.load %arg11[%c0_24, %c0_25] : memref<16x1xf32, #tpu.memory_space<vmem>>, vector<16x1xf32>
    tpu.vector_store %arg11[%c0_24, %c0_25], %59 {strides = array<i32>} : memref<16x1xf32, #tpu.memory_space<vmem>>, vector<16x1xf32>,
    %c0_26 = arith.constant 0 : index
    %c0_27 = arith.constant 0 : index
    %61 = vector.load %arg10[%c0_26, %c0_27] : memref<16x1xf32, #tpu.memory_space<vmem>>, vector<16x1xf32>
    tpu.vector_store %arg10[%c0_26, %c0_27], %49 {strides = array<i32>} : memref<16x1xf32, #tpu.memory_space<vmem>>, vector<16x1xf32>,
    %c1_i32 = arith.constant 1 : i32
    %62 = arith.cmpi eq, %arg1, %c1_i32 : i32
    %63 = arith.extui %62 : i1 to i32
    %c0_i32_28 = arith.constant 0 : i32
    %64 = arith.cmpi ne, %63, %c0_i32_28 : i32
    scf.if %64 {
      %c0_29 = arith.constant 0 : index
      %c0_30 = arith.constant 0 : index
      %65 = vector.load %arg10[%c0_29, %c0_30] : memref<16x1xf32, #tpu.memory_space<vmem>>, vector<16x1xf32>
      %c0_31 = arith.constant 0 : index
      %c0_32 = arith.constant 0 : index
      %c0_33 = arith.constant 0 : index
      %66 = vector.load %arg8[%c0_31, %c0_32, %c0_33] : memref<1x16x1xf32, #tpu.memory_space<vmem>>, vector<1x16x1xf32>
      %67 = vector.shape_cast %66 : vector<1x16x1xf32> to vector<16x1xf32>
      %68 = vector.shape_cast %65 : vector<16x1xf32> to vector<1x16x1xf32>
      tpu.vector_store %arg8[%c0_31, %c0_32, %c0_33], %68 {strides = array<i32>} : memref<1x16x1xf32, #tpu.memory_space<vmem>>, vector<1x16x1xf32>,
      %c0_34 = arith.constant 0 : index
      %c0_35 = arith.constant 0 : index
      %69 = vector.load %arg11[%c0_34, %c0_35] : memref<16x1xf32, #tpu.memory_space<vmem>>, vector<16x1xf32>
      %c0_36 = arith.constant 0 : index
      %c0_37 = arith.constant 0 : index
      %c0_38 = arith.constant 0 : index
      %70 = vector.load %arg9[%c0_36, %c0_37, %c0_38] : memref<1x16x1xf32, #tpu.memory_space<vmem>>, vector<1x16x1xf32>
      %71 = vector.shape_cast %70 : vector<1x16x1xf32> to vector<16x1xf32>
      %72 = vector.shape_cast %69 : vector<16x1xf32> to vector<1x16x1xf32>
      tpu.vector_store %arg9[%c0_36, %c0_37, %c0_38], %72 {strides = array<i32>} : memref<1x16x1xf32, #tpu.memory_space<vmem>>, vector<1x16x1xf32>,
    } else {
    }
    return
  }
  func.func @transform_0(%arg0: i32, %arg1: i32) -> (i32, i32) {
    %c0_i32 = arith.constant 0 : i32
    %c0_i32_0 = arith.constant 0 : i32
    %c0_i32_1 = arith.constant 0 : i32
    return %c0_i32, %c0_i32_0 : i32, i32
  }
  func.func @transform_1(%arg0: i32, %arg1: i32) -> (i32, i32) {
    %c0_i32 = arith.constant 0 : i32
    %c0_i32_0 = arith.constant 0 : i32
    %c0_i32_1 = arith.constant 0 : i32
    return %c0_i32, %c0_i32_0 : i32, i32
  }
  func.func @transform_2(%arg0: i32, %arg1: i32) -> (i32, i32) {
    %c0_i32 = arith.constant 0 : i32
    %c0_i32_0 = arith.constant 0 : i32
    %c0_i32_1 = arith.constant 0 : i32
    return %c0_i32, %c0_i32_0 : i32, i32
  }
  func.func @transform_3(%arg0: i32, %arg1: i32) -> (i32, i32) {
    %c0_i32 = arith.constant 0 : i32
    %c0_i32_0 = arith.constant 0 : i32
    %c0_i32_1 = arith.constant 0 : i32
    return %c0_i32, %c0_i32_0 : i32, i32
  }
  func.func @transform_4(%arg0: i32, %arg1: i32) -> (i32, i32) {
    %c0_i32 = arith.constant 0 : i32
    %c0_i32_0 = arith.constant 0 : i32
    %c0_i32_1 = arith.constant 0 : i32
    return %c0_i32, %c0_i32_0 : i32, i32
  }
  func.func @transform_5(%arg0: i32, %arg1: i32) -> (i32, i32) {
    %c2_i32 = arith.constant 2 : i32
    %0 = arith.muli %arg0, %c2_i32 : i32
    %1 = arith.addi %0, %arg1 : i32
    %c2_i32_0 = arith.constant 2 : i32
    %2 = arith.minsi %1, %c2_i32_0 : i32
    %c0_i32 = arith.constant 0 : i32
    %c0_i32_1 = arith.constant 0 : i32
    return %2, %c0_i32 : i32, i32
  }
  func.func @transform_6(%arg0: i32, %arg1: i32) -> (i32, i32, i32) {
    %c0_i32 = arith.constant 0 : i32
    %c0_i32_0 = arith.constant 0 : i32
    %c0_i32_1 = arith.constant 0 : i32
    return %arg0, %c0_i32, %c0_i32_0 : i32, i32, i32
  }
  func.func @transform_7(%arg0: i32, %arg1: i32) -> (i32, i32, i32) {
    %c0_i32 = arith.constant 0 : i32
    %c0_i32_0 = arith.constant 0 : i32
    %c0_i32_1 = arith.constant 0 : i32
    return %arg0, %c0_i32, %c0_i32_0 : i32, i32, i32
  }
}

</mosaic_0001>

<llo_original>
// kernel: tpu_custom_call.1
$region0: #{tpu_custom_call.1}
  #allocation0 [shape = 'u32[]', space=smem, size = 0x4, offset = 0x4, fixed_abs, tag = 'smem constant byte address 0x4 - core index']
  #allocation1 [shape = 'u32[144,128]{1,0:T(1,128)}', space=vmem, size = 0x12000, scoped, tag = 'internal scratch']
  #allocation2 [shape = 'f32[16,1]{1,0:T(8,128)}', space=vmem, size = 0x2000, scoped, tag = 'scratch operand']
  #allocation3 [shape = 'f32[16,1]{1,0:T(8,128)}', space=vmem, size = 0x2000, scoped, tag = 'scratch operand']
  #allocation4 [shape = 'f32[1,1]{1,0:T(1,128)S(1)}', space=vmem, size = 0x200, scoped, tag = 'scoped memory for tpu_custom_call.1']
  %s0 = inlined_call_operand.hbm [shape: bf16[16,256], index: 0, kind: input, shape index: {}]
  %s1 = inlined_call_operand.vmem [shape: s32[16,1], index: 1, kind: input, shape index: {}]
  %s2 = inlined_call_operand.vmem [shape: f32[16,1], index: 2, kind: input, shape index: {}]
  %s3 = inlined_call_operand.vmem [shape: f32[16,1], index: 3, kind: input, shape index: {}]
  %s4 = inlined_call_operand.<no memory space> [shape: f32[1,1], index: 4, kind: input, shape index: {}]
  %s5 = inlined_call_operand.hbm [shape: f32[1500,256], index: 5, kind: input, shape index: {}]
  %s6 = inlined_call_operand.vmem [shape: f32[2,16,1], index: 6, kind: output, shape index: {0}]
  %s7 = inlined_call_operand.vmem [shape: f32[2,16,1], index: 7, kind: output, shape index: {1}]
  %8 = xla_tuple %s6, %s7
  %s9 = sld [smem:[#allocation0]]
  $region81: #{tpu_custom_call.1} parent=0
    _
  %s11 = ssub.s32 1, %s9
  %s12 = scalar_select 0, %s11, %s9
  %v13 = vstv %s4
  %14 = vst [vmem:[#allocation4] sm:$0x1] %v13
  $region1: #{tpu_custom_call.1} parent=0
    #allocation5 [shape = 'u8[8192]{0}', space=vmem, size = 0x2000, scoped, tag = 'input window, operand 0, single buffered']
    #allocation6 [shape = 's32[2]{0}', space=sflag, size = 0x8, scoped, tag = 'scoped memory for tpu_custom_call.1']
    #allocation7 [shape = 'u8[1048576]{0}', space=vmem, size = 0x100000, scoped, tag = 'input window, operand 5']
    #allocation8 [shape = 's32[2]{0}', space=sflag, size = 0x8, scoped, tag = 'scoped memory for tpu_custom_call.1']
    %15 = vsyncpa [#allocation6], 0
    %16 = vsyncpa [#allocation8], 0
    %s17 = scalar_lea.sflag [#allocation8], 1
    %18 = vsyncpa %s17, 0
    loop: start=0, step=1, limit=6
    $region2: #{tpu_custom_call.1} parent=1 // loop_pre_header
      _
    $region3: #{tpu_custom_call.1} parent=1 // loop_header
      %s20 = sphi 0, %s24
      %p21 = scmp.ge.s32.totalorder %s20, 6
      %s27 = sphi 0, %s39
      %s28 = sphi 0, %s35
      %s29 = sphi 0, %s27
      %s30 = sphi 0, %s28
      %s31 = sphi 0, %s29
      %s32 = sphi 0, %s30
      %s40 = sphi 0, %s40
      %s42 = sphi 0, %s40
      %s43 = sphi 0, %s42
      %s57 = sphi 0, %s43
      %s61 = sphi 0, %s61
      %s63 = sphi 0, %s61
      %s64 = sphi 0, %s63
      %s78 = sphi 0, %s64
      %s82 = sphi 0, %s82
      %s84 = sphi 0, %s82
      %s85 = sphi 0, %s84
      %s99 = sphi 0, %s85
      %s103 = sphi 0, %s103
      %s105 = sphi 0, %s103
      %s106 = sphi 0, %s105
      %s120 = sphi 0, %s106
      %s124 = sphi 0, %s124
      %s126 = sphi 0, %s124
      %s127 = sphi 0, %s126
      %s141 = sphi 0, %s127
      %s155 = sphi 0, %s157
      %s158 = sphi 0, %s155
      %s159 = sphi 0, %s158
      %s175 = sphi 0, %s159
      %s181 = sphi 0, %s183
      %s184 = sphi 0, %s181
      %s185 = sphi 0, %s184
      %s201 = sphi 0, %s185
      %s207 = sphi 0, %s209
      %s210 = sphi 0, %s207
      %s211 = sphi 0, %s210
      %s227 = sphi 0, %s211
    $region4: #{tpu_custom_call.1} parent=1 // loop_header_branch
      %23 = sbr.rel (%p21) target = $region8
    $region5: #{tpu_custom_call.1} parent=1 // loop_body
      %s25 = ssub.s32 %s20, 1
      %s26 = ssub.s32 %s20, 2
      %s33 = sadd.s32 1, %s28
      %p34 = scmp.ge.s32.totalorder %s33, 2
      %s35 = scalar_select %p34, 0, %s33
      %s36 = sadd.s32 1, %s27
      %s37 = scalar_select %p34, %s36, %s27
      %p38 = scmp.ge.s32.totalorder %s37, 2
      %s39 = scalar_select %p38, 0, %s37
      %s41 = sadd.s32 %s40, 1
      %p44 = scmp.eq.s32.totalorder %s20, 3
      %p45 = scmp.ne.s32.totalorder %s40, %s42
      %p46 = scmp.eq.s32.totalorder %s20, 0
      %p47 = por %p45, %p46
      %p48 = scmp.ne.s32.totalorder %s40, %s42
      %p49 = scmp.eq.s32.totalorder %s25, 3
      %p50 = por %p48, %p49
      %p51 = scmp.ne.s32.totalorder %s42, %s43
      %p52 = scmp.eq.s32.totalorder %s25, 0
      %p53 = por %p51, %p52
      %p54 = scmp.ne.s32.totalorder %s42, %s43
      %p55 = scmp.eq.s32.totalorder %s26, 3
      %p56 = por %p54, %p55
      %p58 = scmp.ne.s32.totalorder %s43, %s57
      %p59 = scmp.eq.s32.totalorder %s26, 0
      %p60 = por %p58, %p59
      %s62 = sadd.s32 %s61, 1
      %p65 = scmp.eq.s32.totalorder %s20, 3
      %p66 = scmp.ne.s32.totalorder %s61, %s63
      %p67 = scmp.eq.s32.totalorder %s20, 0
      %p68 = por %p66, %p67
      %p69 = scmp.ne.s32.totalorder %s61, %s63
      %p70 = scmp.eq.s32.totalorder %s25, 3
      %p71 = por %p69, %p70
      %p72 = scmp.ne.s32.totalorder %s63, %s64
      %p73 = scmp.eq.s32.totalorder %s25, 0
      %p74 = por %p72, %p73
      %p75 = scmp.ne.s32.totalorder %s63, %s64
      %p76 = scmp.eq.s32.totalorder %s26, 3
      %p77 = por %p75, %p76
      %p79 = scmp.ne.s32.totalorder %s64, %s78
      %p80 = scmp.eq.s32.totalorder %s26, 0
      %p81 = por %p79, %p80
      %s83 = sadd.s32 %s82, 1
      %p86 = scmp.eq.s32.totalorder %s20, 3
      %p87 = scmp.ne.s32.totalorder %s82, %s84
      %p88 = scmp.eq.s32.totalorder %s20, 0
      %p89 = por %p87, %p88
      %p90 = scmp.ne.s32.totalorder %s82, %s84
      %p91 = scmp.eq.s32.totalorder %s25, 3
      %p92 = por %p90, %p91
      %p93 = scmp.ne.s32.totalorder %s84, %s85
      %p94 = scmp.eq.s32.totalorder %s25, 0
      %p95 = por %p93, %p94
      %p96 = scmp.ne.s32.totalorder %s84, %s85
      %p97 = scmp.eq.s32.totalorder %s26, 3
      %p98 = por %p96, %p97
      %p100 = scmp.ne.s32.totalorder %s85, %s99
      %p101 = scmp.eq.s32.totalorder %s26, 0
      %p102 = por %p100, %p101
      %s104 = sadd.s32 %s103, 1
      %p107 = scmp.eq.s32.totalorder %s20, 3
      %p108 = scmp.ne.s32.totalorder %s103, %s105
      %p109 = scmp.eq.s32.totalorder %s20, 0
      %p110 = por %p108, %p109
      %p111 = scmp.ne.s32.totalorder %s103, %s105
      %p112 = scmp.eq.s32.totalorder %s25, 3
      %p113 = por %p111, %p112
      %p114 = scmp.ne.s32.totalorder %s105, %s106
      %p115 = scmp.eq.s32.totalorder %s25, 0
      %p116 = por %p114, %p115
      %p117 = scmp.ne.s32.totalorder %s105, %s106
      %p118 = scmp.eq.s32.totalorder %s26, 3
      %p119 = por %p117, %p118
      %p121 = scmp.ne.s32.totalorder %s106, %s120
      %p122 = scmp.eq.s32.totalorder %s26, 0
      %p123 = por %p121, %p122
      %s125 = sadd.s32 %s124, 1
      %p128 = scmp.eq.s32.totalorder %s20, 3
      %p129 = scmp.ne.s32.totalorder %s124, %s126
      %p130 = scmp.eq.s32.totalorder %s20, 0
      %p131 = por %p129, %p130
      %p132 = scmp.ne.s32.totalorder %s124, %s126
      %p133 = scmp.eq.s32.totalorder %s25, 3
      %p134 = por %p132, %p133
      %p135 = scmp.ne.s32.totalorder %s126, %s127
      %p136 = scmp.eq.s32.totalorder %s25, 0
      %p137 = por %p135, %p136
      %p138 = scmp.ne.s32.totalorder %s126, %s127
      %p139 = scmp.eq.s32.totalorder %s26, 3
      %p140 = por %p138, %p139
      %p142 = scmp.ne.s32.totalorder %s127, %s141
      %p143 = scmp.eq.s32.totalorder %s26, 0
      %p144 = por %p142, %p143
      %s145 = smul.u32 %s27, 2
      %s146 = sadd.s32 %s145, %s28
      %p147 = scmp.lt.s32.totalorder %s146, 2
      %s148 = scalar_select %p147, %s146, 2
      %s149 = smul.u32 %s39, 2
      %s150 = sadd.s32 %s149, %s35
      %p151 = scmp.lt.s32.totalorder %s150, 2
      %s152 = scalar_select %p151, %s150, 2
      %s153 = ssub.s32 %s148, %s152
      %p154 = scmp.eq.s32.totalorder %s153, 0
      %s156 = sadd.s32 %s155, 1
      %s157 = scalar_select %p154, %s155, %s156
      %p160 = pneg %p154
      %p161 = scmp.eq.s32.totalorder %s20, 3
      %p162 = por %p160, %p161
      %p163 = scmp.ne.s32.totalorder %s155, %s158
      %p164 = scmp.eq.s32.totalorder %s20, 0
      %p165 = por %p163, %p164
      %p166 = scmp.ne.s32.totalorder %s155, %s158
      %p167 = scmp.eq.s32.totalorder %s25, 3
      %p168 = por %p166, %p167
      %p169 = scmp.ne.s32.totalorder %s158, %s159
      %p170 = scmp.eq.s32.totalorder %s25, 0
      %p171 = por %p169, %p170
      %p172 = scmp.ne.s32.totalorder %s158, %s159
      %p173 = scmp.eq.s32.totalorder %s26, 3
      %p174 = por %p172, %p173
      %p176 = scmp.ne.s32.totalorder %s159, %s175
      %p177 = scmp.eq.s32.totalorder %s26, 0
      %p178 = por %p176, %p177
      %s179 = ssub.s32 %s27, %s39
      %p180 = scmp.eq.s32.totalorder %s179, 0
      %s182 = sadd.s32 %s181, 1
      %s183 = scalar_select %p180, %s181, %s182
      %p186 = pneg %p180
      %p187 = scmp.eq.s32.totalorder %s20, 3
      %p188 = por %p186, %p187
      %p189 = scmp.ne.s32.totalorder %s181, %s184
      %p190 = scmp.eq.s32.totalorder %s20, 0
      %p191 = por %p189, %p190
      %p192 = scmp.ne.s32.totalorder %s181, %s184
      %p193 = scmp.eq.s32.totalorder %s25, 3
      %p194 = por %p192, %p193
      %p195 = scmp.ne.s32.totalorder %s184, %s185
      %p196 = scmp.eq.s32.totalorder %s25, 0
      %p197 = por %p195, %p196
      %p198 = scmp.ne.s32.totalorder %s184, %s185
      %p199 = scmp.eq.s32.totalorder %s26, 3
      %p200 = por %p198, %p199
      %p202 = scmp.ne.s32.totalorder %s185, %s201
      %p203 = scmp.eq.s32.totalorder %s26, 0
      %p204 = por %p202, %p203
      %s205 = ssub.s32 %s27, %s39
      %p206 = scmp.eq.s32.totalorder %s205, 0
      %s208 = sadd.s32 %s207, 1
      %s209 = scalar_select %p206, %s207, %s208
      %p212 = pneg %p206
      %p213 = scmp.eq.s32.totalorder %s20, 3
      %p214 = por %p212, %p213
      %p215 = scmp.ne.s32.totalorder %s207, %s210
      %p216 = scmp.eq.s32.totalorder %s20, 0
      %p217 = por %p215, %p216
      %p218 = scmp.ne.s32.totalorder %s207, %s210
      %p219 = scmp.eq.s32.totalorder %s25, 3
      %p220 = por %p218, %p219
      %p221 = scmp.ne.s32.totalorder %s210, %s211
      %p222 = scmp.eq.s32.totalorder %s25, 0
      %p223 = por %p221, %p222
      %p224 = scmp.ne.s32.totalorder %s210, %s211
      %p225 = scmp.eq.s32.totalorder %s26, 3
      %p226 = por %p224, %p225
      %p228 = scmp.ne.s32.totalorder %s211, %s227
      %p229 = scmp.eq.s32.totalorder %s26, 0
      %p230 = por %p228, %p229
      %p231 = scmp.le.s32.totalorder 1, %s20
      %p232 = scmp.lt.s32.totalorder %s20, 5
      %p233 = pnand %p231, %p232
      %p234 = pneg %p233
      // Predicated region
      $region9: #{tpu_custom_call.1} parent=5 // pred_check
        _
      $region10: #{tpu_custom_call.1} parent=5 // pred_check_branch
        %236 = sbr.rel (%p233) target = $region12
      $region11: #{tpu_custom_call.1} parent=5 // pred_region
        %s237 = ssub.s32 %s20, 1
        // Predicated region
        $region13: #{tpu_custom_call.1} parent=11 // pred_check
          %p238 = pneg %p53
        $region14: #{tpu_custom_call.1} parent=11 // pred_check_branch
          %240 = sbr.rel (%p238) target = $region16
        $region15: #{tpu_custom_call.1} parent=11 // pred_region
          %s242 = ssub.s32 256, 256
          %243 = vsyncadd [#allocation6], %s242
          %s244 = sshll.u32 [#allocation5], 4
          %s245 = int_to_ptr.vmem [resolvable:$true] %s244
          %250 = dma.hbm_to_vmem [thread:$0]  %s0, 256, %s245, [#allocation6], 128, 128, 8
        $region16: #{tpu_custom_call.1} parent=11 // pred_fallthru
          _
        // Predicated region
        $region17: #{tpu_custom_call.1} parent=11 // pred_check
          %p251 = pneg %p74
        $region18: #{tpu_custom_call.1} parent=11 // pred_check_branch
          %253 = sbr.rel (%p251) target = $region20
        $region19: #{tpu_custom_call.1} parent=11 // pred_region
          _
        $region20: #{tpu_custom_call.1} parent=11 // pred_fallthru
          _
        // Predicated region
        $region21: #{tpu_custom_call.1} parent=11 // pred_check
          %p254 = pneg %p95
        $region22: #{tpu_custom_call.1} parent=11 // pred_check_branch
          %256 = sbr.rel (%p254) target = $region24
        $region23: #{tpu_custom_call.1} parent=11 // pred_region
          _
        $region24: #{tpu_custom_call.1} parent=11 // pred_fallthru
          _
        // Predicated region
        $region25: #{tpu_custom_call.1} parent=11 // pred_check
          %p257 = pneg %p116
        $region26: #{tpu_custom_call.1} parent=11 // pred_check_branch
          %259 = sbr.rel (%p257) target = $region28
        $region27: #{tpu_custom_call.1} parent=11 // pred_region
          _
        $region28: #{tpu_custom_call.1} parent=11 // pred_fallthru
          _
        // Predicated region
        $region29: #{tpu_custom_call.1} parent=11 // pred_check
          %p260 = pneg %p137
        $region30: #{tpu_custom_call.1} parent=11 // pred_check_branch
          %262 = sbr.rel (%p260) target = $region32
        $region31: #{tpu_custom_call.1} parent=11 // pred_region
          _
        $region32: #{tpu_custom_call.1} parent=11 // pred_fallthru
          _
      $region12: #{tpu_custom_call.1} parent=5 // pred_fallthru
        _
      %p263 = scmp.lt.s32.totalorder %s20, 4
      // Predicated region
      $region33: #{tpu_custom_call.1} parent=5 // pred_check
        %p264 = pneg %p263
      $region34: #{tpu_custom_call.1} parent=5 // pred_check_branch
        %266 = sbr.rel (%p264) target = $region36
      $region35: #{tpu_custom_call.1} parent=5 // pred_region
        // Predicated region
        $region37: #{tpu_custom_call.1} parent=35 // pred_check
          %p267 = pneg %p165
        $region38: #{tpu_custom_call.1} parent=35 // pred_check_branch
          %269 = sbr.rel (%p267) target = $region40
        $region39: #{tpu_custom_call.1} parent=35 // pred_region
          %s270 = sand.u32 %s155, 1
          %s271 = scalar_lea.sflag [#allocation8], %s270
          %s272 = sand.u32 %s155, 1
          %s273 = smul.addr %s272, 1024
          %s274 = scalar_lea.vmem [#allocation7], %s273
          %s275 = smul.u32 %s27, 2
          %s276 = sadd.s32 %s275, %s28
          %p277 = scmp.lt.s32.totalorder %s276, 2
          %s278 = scalar_select %p277, %s276, 2
          %s279 = smul.u32 64, %s278
          %s280 = ssub.s32 188, %s279
          %p281 = scmp.lt.s32.totalorder %s280, 64
          %s282 = scalar_select %p281, %s280, 64
          %s283 = smul.u32 128, %s282
          %s284 = smul.u32 %s283, 2
          %s286 = ssub.s32 16384, %s284
          %287 = vsyncadd %s271, %s286
          %p288 = scmp.ne.s32.totalorder 0, %s284
          %s289 = smul.addr %s279, 2
          %s290 = smul.addr %s289, 128
          %s291 = scalar_lea.hbm %s5, %s290
          %s292 = smul.u32 16, %s282
          %s293 = sshll.u32 %s274, 4
          %s294 = int_to_ptr.vmem [resolvable:$true] %s293
          %s295 = sshll.u32 %s292, 4
          %299 = dma.hbm_to_vmem [thread:$0]  (%p288), %s291, %s295, %s294, %s271, 256, 256, 16
        $region40: #{tpu_custom_call.1} parent=35 // pred_fallthru
          _
      $region36: #{tpu_custom_call.1} parent=5 // pred_fallthru
        _
      %p300 = scmp.le.s32.totalorder 1, %s20
      %p301 = scmp.lt.s32.totalorder %s20, 5
      %p302 = pnand %p300, %p301
      %p303 = pneg %p302
      // Predicated region
      $region41: #{tpu_custom_call.1} parent=5 // pred_check
        _
      $region42: #{tpu_custom_call.1} parent=5 // pred_check_branch
        %305 = sbr.rel (%p302) target = $region44
      $region43: #{tpu_custom_call.1} parent=5 // pred_region
        %s306 = ssub.s32 %s20, 1
        // Predicated region
        $region45: #{tpu_custom_call.1} parent=43 // pred_check
          %p307 = pneg %p53
        $region46: #{tpu_custom_call.1} parent=43 // pred_check_branch
          %309 = sbr.rel (%p307) target = $region48
        $region47: #{tpu_custom_call.1} parent=43 // pred_region
          %310 = dma.done [#allocation6], 256
        $region48: #{tpu_custom_call.1} parent=43 // pred_fallthru
          _
        %s311 = sand.u32 %s158, 1
        %s312 = scalar_lea.sflag [#allocation8], %s311
        %s313 = sand.u32 %s158, 1
        %s314 = smul.addr %s313, 1024
        %s315 = scalar_lea.vmem [#allocation7], %s314
        // Predicated region
        $region49: #{tpu_custom_call.1} parent=43 // pred_check
          %p316 = pneg %p171
        $region50: #{tpu_custom_call.1} parent=43 // pred_check_branch
          %318 = sbr.rel (%p316) target = $region52
        $region51: #{tpu_custom_call.1} parent=43 // pred_region
          %319 = dma.done %s312, 16384
        $region52: #{tpu_custom_call.1} parent=43 // pred_fallthru
          _
        %p320 = pneg %p53
        %p321 = pneg %p50
        %p322 = pneg %p74
        %p323 = pneg %p71
        %p324 = pneg %p95
        %p325 = pneg %p92
        %p326 = pneg %p116
        %p327 = pneg %p113
        %p328 = pneg %p137
        %p329 = pneg %p134
        %s330 = sand.u32 %s158, 1
        %s331 = scalar_lea.sflag [#allocation8], %s330
        %s332 = sand.u32 %s158, 1
        %s333 = smul.addr %s332, 1024
        %s334 = scalar_lea.vmem [#allocation7], %s333
        %p335 = pneg %p171
        %p336 = pneg %p168
        %p337 = pneg %p197
        %p338 = pneg %p194
        %p339 = scmp.lt.s32.totalorder %s29, 1
        %s340 = scalar_select %p339, %s29, 1
        %s341 = smul.addr %s340, 2
        %s342 = smul.addr %s341, 8
        %s343 = scalar_lea.vmem %s6, %s342
        %p344 = pneg %p223
        %p345 = pneg %p220
        %p346 = scmp.lt.s32.totalorder %s29, 1
        %s347 = scalar_select %p346, %s29, 1
        %s348 = smul.addr %s347, 2
        %s349 = smul.addr %s348, 8
        %s350 = scalar_lea.vmem %s7, %s349
        %s351 = smul.u32 %s29, 2
        %s352 = sadd.s32 %s351, %s30
        %p353 = scmp.lt.s32.totalorder %s352, 2
        %s354 = scalar_select %p353, %s352, 2
        %s355 = smul.u32 64, %s354
        %s356 = ssub.s32 188, %s355
        %p357 = scmp.lt.s32.totalorder %s356, 64
        %s358 = scalar_select %p357, %s356, 64
        %s359 = smul.u32 128, %s358
        %s360 = smul.u32 %s359, 2
        %p361 = scmp.lt.s32.totalorder %s29, 1
        %s362 = scalar_select %p361, %s29, 1
        %s363 = smul.addr %s362, 2
        %s364 = smul.addr %s363, 8
        %s365 = scalar_lea.vmem %s6, %s364
        %p366 = scmp.lt.s32.totalorder %s29, 1
        %s367 = scalar_select %p366, %s29, 1
        %s368 = smul.addr %s367, 2
        %s369 = smul.addr %s368, 8
        %s370 = scalar_lea.vmem %s7, %s369
        %p371 = scmp.eq.s32.totalorder %s30, 0
        // Predicated region
        $region53: #{tpu_custom_call.1} parent=43 // pred_check
          %p372 = pneg %p371
        $region54: #{tpu_custom_call.1} parent=43 // pred_check_branch
          %374 = sbr.rel (%p372) target = $region56
        $region55: #{tpu_custom_call.1} parent=43 // pred_region
          %vm375 = vcmask 7168
          %376 = vst.msk [vmem:[#allocation2] sm:$0xff] %vm375, -1e+30
          %377 = vst.msk [vmem:[#allocation2 + $0x8] sm:$0xff] %vm375, -1e+30
          %378 = vst.msk [vmem:[#allocation3] sm:$0xff] %vm375, 0.0
          %379 = vst.msk [vmem:[#allocation3 + $0x8] sm:$0xff] %vm375, 0.0
        $region56: #{tpu_custom_call.1} parent=43 // pred_fallthru
          _
        %v380 = vld [vmem:[%s315] sm:$0xff]
        %v381 = vld [vmem:[%s315 + $0x8] sm:$0xff]
        %v382 = vld [vmem:[%s315 + $0x10] sm:$0xff]
        %v383 = vld [vmem:[%s315 + $0x18] sm:$0xff]
        %v384 = vld [vmem:[%s315 + $0x20] sm:$0xff]
        %v385 = vld [vmem:[%s315 + $0x28] sm:$0xff]
        %v386 = vld [vmem:[%s315 + $0x30] sm:$0xff]
        %v387 = vld [vmem:[%s315 + $0x38] sm:$0xff]
        %v388 = vld [vmem:[%s315 + $0x40] sm:$0xff]
        %v389 = vld [vmem:[%s315 + $0x48] sm:$0xff]
        %v390 = vld [vmem:[%s315 + $0x50] sm:$0xff]
        %v391 = vld [vmem:[%s315 + $0x58] sm:$0xff]
        %v392 = vld [vmem:[%s315 + $0x60] sm:$0xff]
        %v393 = vld [vmem:[%s315 + $0x68] sm:$0xff]
        %v394 = vld [vmem:[%s315 + $0x70] sm:$0xff]
        %v395 = vld [vmem:[%s315 + $0x78] sm:$0xff]
        %v396 = vld [vmem:[%s315 + $0x80] sm:$0xff]
        %v397 = vld [vmem:[%s315 + $0x88] sm:$0xff]
        %v398 = vld [vmem:[%s315 + $0x90] sm:$0xff]
        %v399 = vld [vmem:[%s315 + $0x98] sm:$0xff]
        %v400 = vld [vmem:[%s315 + $0xa0] sm:$0xff]
        %v401 = vld [vmem:[%s315 + $0xa8] sm:$0xff]
        %v402 = vld [vmem:[%s315 + $0xb0] sm:$0xff]
        %v403 = vld [vmem:[%s315 + $0xb8] sm:$0xff]
        %v404 = vld [vmem:[%s315 + $0xc0] sm:$0xff]
        %v405 = vld [vmem:[%s315 + $0xc8] sm:$0xff]
        %v406 = vld [vmem:[%s315 + $0xd0] sm:$0xff]
        %v407 = vld [vmem:[%s315 + $0xd8] sm:$0xff]
        %v408 = vld [vmem:[%s315 + $0xe0] sm:$0xff]
        %v409 = vld [vmem:[%s315 + $0xe8] sm:$0xff]
        %v410 = vld [vmem:[%s315 + $0xf0] sm:$0xff]
        %v411 = vld [vmem:[%s315 + $0xf8] sm:$0xff]
        %v412 = vld [vmem:[%s315 + $0x100] sm:$0xff]
        %v413 = vld [vmem:[%s315 + $0x108] sm:$0xff]
        %v414 = vld [vmem:[%s315 + $0x110] sm:$0xff]
        %v415 = vld [vmem:[%s315 + $0x118] sm:$0xff]
        %v416 = vld [vmem:[%s315 + $0x120] sm:$0xff]
        %v417 = vld [vmem:[%s315 + $0x128] sm:$0xff]
        %v418 = vld [vmem:[%s315 + $0x130] sm:$0xff]
        %v419 = vld [vmem:[%s315 + $0x138] sm:$0xff]
        %v420 = vld [vmem:[%s315 + $0x140] sm:$0xff]
        %v421 = vld [vmem:[%s315 + $0x148] sm:$0xff]
        %v422 = vld [vmem:[%s315 + $0x150] sm:$0xff]
        %v423 = vld [vmem:[%s315 + $0x158] sm:$0xff]
        %v424 = vld [vmem:[%s315 + $0x160] sm:$0xff]
        %v425 = vld [vmem:[%s315 + $0x168] sm:$0xff]
        %v426 = vld [vmem:[%s315 + $0x170] sm:$0xff]
        %v427 = vld [vmem:[%s315 + $0x178] sm:$0xff]
        %v428 = vld [vmem:[%s315 + $0x180] sm:$0xff]
        %v429 = vld [vmem:[%s315 + $0x188] sm:$0xff]
        %v430 = vld [vmem:[%s315 + $0x190] sm:$0xff]
        %v431 = vld [vmem:[%s315 + $0x198] sm:$0xff]
        %v432 = vld [vmem:[%s315 + $0x1a0] sm:$0xff]
        %v433 = vld [vmem:[%s315 + $0x1a8] sm:$0xff]
        %v434 = vld [vmem:[%s315 + $0x1b0] sm:$0xff]
        %v435 = vld [vmem:[%s315 + $0x1b8] sm:$0xff]
        %v436 = vld [vmem:[%s315 + $0x1c0] sm:$0xff]
        %v437 = vld [vmem:[%s315 + $0x1c8] sm:$0xff]
        %v438 = vld [vmem:[%s315 + $0x1d0] sm:$0xff]
        %v439 = vld [vmem:[%s315 + $0x1d8] sm:$0xff]
        %v440 = vld [vmem:[%s315 + $0x1e0] sm:$0xff]
        %v441 = vld [vmem:[%s315 + $0x1e8] sm:$0xff]
        %v442 = vld [vmem:[%s315 + $0x1f0] sm:$0xff]
        %v443 = vld [vmem:[%s315 + $0x1f8] sm:$0xff]
        %v444 = vld [vmem:[%s315 + $0x200] sm:$0xff]
        %v445 = vld [vmem:[%s315 + $0x208] sm:$0xff]
        %v446 = vld [vmem:[%s315 + $0x210] sm:$0xff]
        %v447 = vld [vmem:[%s315 + $0x218] sm:$0xff]
        %v448 = vld [vmem:[%s315 + $0x220] sm:$0xff]
        %v449 = vld [vmem:[%s315 + $0x228] sm:$0xff]
        %v450 = vld [vmem:[%s315 + $0x230] sm:$0xff]
        %v451 = vld [vmem:[%s315 + $0x238] sm:$0xff]
        %v452 = vld [vmem:[%s315 + $0x240] sm:$0xff]
        %v453 = vld [vmem:[%s315 + $0x248] sm:$0xff]
        %v454 = vld [vmem:[%s315 + $0x250] sm:$0xff]
        %v455 = vld [vmem:[%s315 + $0x258] sm:$0xff]
        %v456 = vld [vmem:[%s315 + $0x260] sm:$0xff]
        %v457 = vld [vmem:[%s315 + $0x268] sm:$0xff]
        %v458 = vld [vmem:[%s315 + $0x270] sm:$0xff]
        %v459 = vld [vmem:[%s315 + $0x278] sm:$0xff]
        %v460 = vld [vmem:[%s315 + $0x280] sm:$0xff]
        %v461 = vld [vmem:[%s315 + $0x288] sm:$0xff]
        %v462 = vld [vmem:[%s315 + $0x290] sm:$0xff]
        %v463 = vld [vmem:[%s315 + $0x298] sm:$0xff]
        %v464 = vld [vmem:[%s315 + $0x2a0] sm:$0xff]
        %v465 = vld [vmem:[%s315 + $0x2a8] sm:$0xff]
        %v466 = vld [vmem:[%s315 + $0x2b0] sm:$0xff]
        %v467 = vld [vmem:[%s315 + $0x2b8] sm:$0xff]
        %v468 = vld [vmem:[%s315 + $0x2c0] sm:$0xff]
        %v469 = vld [vmem:[%s315 + $0x2c8] sm:$0xff]
        %v470 = vld [vmem:[%s315 + $0x2d0] sm:$0xff]
        %v471 = vld [vmem:[%s315 + $0x2d8] sm:$0xff]
        %v472 = vld [vmem:[%s315 + $0x2e0] sm:$0xff]
        %v473 = vld [vmem:[%s315 + $0x2e8] sm:$0xff]
        %v474 = vld [vmem:[%s315 + $0x2f0] sm:$0xff]
        %v475 = vld [vmem:[%s315 + $0x2f8] sm:$0xff]
        %v476 = vld [vmem:[%s315 + $0x300] sm:$0xff]
        %v477 = vld [vmem:[%s315 + $0x308] sm:$0xff]
        %v478 = vld [vmem:[%s315 + $0x310] sm:$0xff]
        %v479 = vld [vmem:[%s315 + $0x318] sm:$0xff]
        %v480 = vld [vmem:[%s315 + $0x320] sm:$0xff]
        %v481 = vld [vmem:[%s315 + $0x328] sm:$0xff]
        %v482 = vld [vmem:[%s315 + $0x330] sm:$0xff]
        %v483 = vld [vmem:[%s315 + $0x338] sm:$0xff]
        %v484 = vld [vmem:[%s315 + $0x340] sm:$0xff]
        %v485 = vld [vmem:[%s315 + $0x348] sm:$0xff]
        %v486 = vld [vmem:[%s315 + $0x350] sm:$0xff]
        %v487 = vld [vmem:[%s315 + $0x358] sm:$0xff]
        %v488 = vld [vmem:[%s315 + $0x360] sm:$0xff]
        %v489 = vld [vmem:[%s315 + $0x368] sm:$0xff]
        %v490 = vld [vmem:[%s315 + $0x370] sm:$0xff]
        %v491 = vld [vmem:[%s315 + $0x378] sm:$0xff]
        %v492 = vld [vmem:[%s315 + $0x380] sm:$0xff]
        %v493 = vld [vmem:[%s315 + $0x388] sm:$0xff]
        %v494 = vld [vmem:[%s315 + $0x390] sm:$0xff]
        %v495 = vld [vmem:[%s315 + $0x398] sm:$0xff]
        %v496 = vld [vmem:[%s315 + $0x3a0] sm:$0xff]
        %v497 = vld [vmem:[%s315 + $0x3a8] sm:$0xff]
        %v498 = vld [vmem:[%s315 + $0x3b0] sm:$0xff]
        %v499 = vld [vmem:[%s315 + $0x3b8] sm:$0xff]
        %v500 = vld [vmem:[%s315 + $0x3c0] sm:$0xff]
        %v501 = vld [vmem:[%s315 + $0x3c8] sm:$0xff]
        %v502 = vld [vmem:[%s315 + $0x3d0] sm:$0xff]
        %v503 = vld [vmem:[%s315 + $0x3d8] sm:$0xff]
        %v504 = vld [vmem:[%s315 + $0x3e0] sm:$0xff]
        %v505 = vld [vmem:[%s315 + $0x3e8] sm:$0xff]
        %v506 = vld [vmem:[%s315 + $0x3f0] sm:$0xff]
        %v507 = vld [vmem:[%s315 + $0x3f8] sm:$0xff]
        %v508 = vmul.f32 %v380, %v380
        %v509 = vmul.f32 %v381, %v381
        %v510 = vmul.f32 %v382, %v382
        %v511 = vmul.f32 %v383, %v383
        %v512 = vmul.f32 %v384, %v384
        %v513 = vmul.f32 %v385, %v385
        %v514 = vmul.f32 %v386, %v386
        %v515 = vmul.f32 %v387, %v387
        %v516 = vmul.f32 %v388, %v388
        %v517 = vmul.f32 %v389, %v389
        %v518 = vmul.f32 %v390, %v390
        %v519 = vmul.f32 %v391, %v391
        %v520 = vmul.f32 %v392, %v392
        %v521 = vmul.f32 %v393, %v393
        %v522 = vmul.f32 %v394, %v394
        %v523 = vmul.f32 %v395, %v395
        %v524 = vmul.f32 %v396, %v396
        %v525 = vmul.f32 %v397, %v397
        %v526 = vmul.f32 %v398, %v398
        %v527 = vmul.f32 %v399, %v399
        %v528 = vmul.f32 %v400, %v400
        %v529 = vmul.f32 %v401, %v401
        %v530 = vmul.f32 %v402, %v402
        %v531 = vmul.f32 %v403, %v403
        %v532 = vmul.f32 %v404, %v404
        %v533 = vmul.f32 %v405, %v405
        %v534 = vmul.f32 %v406, %v406
        %v535 = vmul.f32 %v407, %v407
        %v536 = vmul.f32 %v408, %v408
        %v537 = vmul.f32 %v409, %v409
        %v538 = vmul.f32 %v410, %v410
        %v539 = vmul.f32 %v411, %v411
        %v540 = vmul.f32 %v412, %v412
        %v541 = vmul.f32 %v413, %v413
        %v542 = vmul.f32 %v414, %v414
        %v543 = vmul.f32 %v415, %v415
        %v544 = vmul.f32 %v416, %v416
        %v545 = vmul.f32 %v417, %v417
        %v546 = vmul.f32 %v418, %v418
        %v547 = vmul.f32 %v419, %v419
        %v548 = vmul.f32 %v420, %v420
        %v549 = vmul.f32 %v421, %v421
        %v550 = vmul.f32 %v422, %v422
        %v551 = vmul.f32 %v423, %v423
        %v552 = vmul.f32 %v424, %v424
        %v553 = vmul.f32 %v425, %v425
        %v554 = vmul.f32 %v426, %v426
        %v555 = vmul.f32 %v427, %v427
        %v556 = vmul.f32 %v428, %v428
        %v557 = vmul.f32 %v429, %v429
        %v558 = vmul.f32 %v430, %v430
        %v559 = vmul.f32 %v431, %v431
        %v560 = vmul.f32 %v432, %v432
        %v561 = vmul.f32 %v433, %v433
        %v562 = vmul.f32 %v434, %v434
        %v563 = vmul.f32 %v435, %v435
        %v564 = vmul.f32 %v436, %v436
        %v565 = vmul.f32 %v437, %v437
        %v566 = vmul.f32 %v438, %v438
        %v567 = vmul.f32 %v439, %v439
        %v568 = vmul.f32 %v440, %v440
        %v569 = vmul.f32 %v441, %v441
        %v570 = vmul.f32 %v442, %v442
        %v571 = vmul.f32 %v443, %v443
        %v572 = vmul.f32 %v444, %v444
        %v573 = vmul.f32 %v445, %v445
        %v574 = vmul.f32 %v446, %v446
        %v575 = vmul.f32 %v447, %v447
        %v576 = vmul.f32 %v448, %v448
        %v577 = vmul.f32 %v449, %v449
        %v578 = vmul.f32 %v450, %v450
        %v579 = vmul.f32 %v451, %v451
        %v580 = vmul.f32 %v452, %v452
        %v581 = vmul.f32 %v453, %v453
        %v582 = vmul.f32 %v454, %v454
        %v583 = vmul.f32 %v455, %v455
        %v584 = vmul.f32 %v456, %v456
        %v585 = vmul.f32 %v457, %v457
        %v586 = vmul.f32 %v458, %v458
        %v587 = vmul.f32 %v459, %v459
        %v588 = vmul.f32 %v460, %v460
        %v589 = vmul.f32 %v461, %v461
        %v590 = vmul.f32 %v462, %v462
        %v591 = vmul.f32 %v463, %v463
        %v592 = vmul.f32 %v464, %v464
        %v593 = vmul.f32 %v465, %v465
        %v594 = vmul.f32 %v466, %v466
        %v595 = vmul.f32 %v467, %v467
        %v596 = vmul.f32 %v468, %v468
        %v597 = vmul.f32 %v469, %v469
        %v598 = vmul.f32 %v470, %v470
        %v599 = vmul.f32 %v471, %v471
        %v600 = vmul.f32 %v472, %v472
        %v601 = vmul.f32 %v473, %v473
        %v602 = vmul.f32 %v474, %v474
        %v603 = vmul.f32 %v475, %v475
        %v604 = vmul.f32 %v476, %v476
        %v605 = vmul.f32 %v477, %v477
        %v606 = vmul.f32 %v478, %v478
        %v607 = vmul.f32 %v479, %v479
        %v608 = vmul.f32 %v480, %v480
        %v609 = vmul.f32 %v481, %v481
        %v610 = vmul.f32 %v482, %v482
        %v611 = vmul.f32 %v483, %v483
        %v612 = vmul.f32 %v484, %v484
        %v613 = vmul.f32 %v485, %v485
        %v614 = vmul.f32 %v486, %v486
        %v615 = vmul.f32 %v487, %v487
        %v616 = vmul.f32 %v488, %v488
        %v617 = vmul.f32 %v489, %v489
        %v618 = vmul.f32 %v490, %v490
        %v619 = vmul.f32 %v491, %v491
        %v620 = vmul.f32 %v492, %v492
        %v621 = vmul.f32 %v493, %v493
        %v622 = vmul.f32 %v494, %v494
        %v623 = vmul.f32 %v495, %v495
        %v624 = vmul.f32 %v496, %v496
        %v625 = vmul.f32 %v497, %v497
        %v626 = vmul.f32 %v498, %v498
        %v627 = vmul.f32 %v499, %v499
        %v628 = vmul.f32 %v500, %v500
        %v629 = vmul.f32 %v501, %v501
        %v630 = vmul.f32 %v502, %v502
        %v631 = vmul.f32 %v503, %v503
        %v632 = vmul.f32 %v504, %v504
        %v633 = vmul.f32 %v505, %v505
        %v634 = vmul.f32 %v506, %v506
        %v635 = vmul.f32 %v507, %v507
        %v636 = vadd.f32 %v508, %v509
        %637 = vadd.xlane.f32.xlu0 %v636
        %v638 = vpop.xlane.xlu0 %637
        %v639 = vadd.f32 %v510, %v511
        %640 = vadd.xlane.f32.xlu0 %v639
        %v641 = vpop.xlane.xlu0 %640
        %v642 = vadd.f32 %v512, %v513
        %643 = vadd.xlane.f32.xlu0 %v642
        %v644 = vpop.xlane.xlu0 %643
        %v645 = vadd.f32 %v514, %v515
        %646 = vadd.xlane.f32.xlu0 %v645
        %v647 = vpop.xlane.xlu0 %646
        %v648 = vadd.f32 %v516, %v517
        %649 = vadd.xlane.f32.xlu0 %v648
        %v650 = vpop.xlane.xlu0 %649
        %v651 = vadd.f32 %v518, %v519
        %652 = vadd.xlane.f32.xlu0 %v651
        %v653 = vpop.xlane.xlu0 %652
        %v654 = vadd.f32 %v520, %v521
        %655 = vadd.xlane.f32.xlu0 %v654
        %v656 = vpop.xlane.xlu0 %655
        %v657 = vadd.f32 %v522, %v523
        %658 = vadd.xlane.f32.xlu0 %v657
        %v659 = vpop.xlane.xlu0 %658
        %v660 = vadd.f32 %v524, %v525
        %661 = vadd.xlane.f32.xlu0 %v660
        %v662 = vpop.xlane.xlu0 %661
        %v663 = vadd.f32 %v526, %v527
        %664 = vadd.xlane.f32.xlu0 %v663
        %v665 = vpop.xlane.xlu0 %664
        %v666 = vadd.f32 %v528, %v529
        %667 = vadd.xlane.f32.xlu0 %v666
        %v668 = vpop.xlane.xlu0 %667
        %v669 = vadd.f32 %v530, %v531
        %670 = vadd.xlane.f32.xlu0 %v669
        %v671 = vpop.xlane.xlu0 %670
        %v672 = vadd.f32 %v532, %v533
        %673 = vadd.xlane.f32.xlu0 %v672
        %v674 = vpop.xlane.xlu0 %673
        %v675 = vadd.f32 %v534, %v535
        %676 = vadd.xlane.f32.xlu0 %v675
        %v677 = vpop.xlane.xlu0 %676
        %v678 = vadd.f32 %v536, %v537
        %679 = vadd.xlane.f32.xlu0 %v678
        %v680 = vpop.xlane.xlu0 %679
        %v681 = vadd.f32 %v538, %v539
        %682 = vadd.xlane.f32.xlu0 %v681
        %v683 = vpop.xlane.xlu0 %682
        %v684 = vadd.f32 %v540, %v541
        %685 = vadd.xlane.f32.xlu0 %v684
        %v686 = vpop.xlane.xlu0 %685
        %v687 = vadd.f32 %v542, %v543
        %688 = vadd.xlane.f32.xlu0 %v687
        %v689 = vpop.xlane.xlu0 %688
        %v690 = vadd.f32 %v544, %v545
        %691 = vadd.xlane.f32.xlu0 %v690
        %v692 = vpop.xlane.xlu0 %691
        %v693 = vadd.f32 %v546, %v547
        %694 = vadd.xlane.f32.xlu0 %v693
        %v695 = vpop.xlane.xlu0 %694
        %v696 = vadd.f32 %v548, %v549
        %697 = vadd.xlane.f32.xlu0 %v696
        %v698 = vpop.xlane.xlu0 %697
        %v699 = vadd.f32 %v550, %v551
        %700 = vadd.xlane.f32.xlu0 %v699
        %v701 = vpop.xlane.xlu0 %700
        %v702 = vadd.f32 %v552, %v553
        %703 = vadd.xlane.f32.xlu0 %v702
        %v704 = vpop.xlane.xlu0 %703
        %v705 = vadd.f32 %v554, %v555
        %706 = vadd.xlane.f32.xlu0 %v705
        %v707 = vpop.xlane.xlu0 %706
        %v708 = vadd.f32 %v556, %v557
        %709 = vadd.xlane.f32.xlu0 %v708
        %v710 = vpop.xlane.xlu0 %709
        %v711 = vadd.f32 %v558, %v559
        %712 = vadd.xlane.f32.xlu0 %v711
        %v713 = vpop.xlane.xlu0 %712
        %v714 = vadd.f32 %v560, %v561
        %715 = vadd.xlane.f32.xlu0 %v714
        %v716 = vpop.xlane.xlu0 %715
        %v717 = vadd.f32 %v562, %v563
        %718 = vadd.xlane.f32.xlu0 %v717
        %v719 = vpop.xlane.xlu0 %718
        %v720 = vadd.f32 %v564, %v565
        %721 = vadd.xlane.f32.xlu0 %v720
        %v722 = vpop.xlane.xlu0 %721
        %v723 = vadd.f32 %v566, %v567
        %724 = vadd.xlane.f32.xlu0 %v723
        %v725 = vpop.xlane.xlu0 %724
        %v726 = vadd.f32 %v568, %v569
        %727 = vadd.xlane.f32.xlu0 %v726
        %v728 = vpop.xlane.xlu0 %727
        %v729 = vadd.f32 %v570, %v571
        %730 = vadd.xlane.f32.xlu0 %v729
        %v731 = vpop.xlane.xlu0 %730
        %v732 = vadd.f32 %v572, %v573
        %733 = vadd.xlane.f32.xlu0 %v732
        %v734 = vpop.xlane.xlu0 %733
        %v735 = vadd.f32 %v574, %v575
        %736 = vadd.xlane.f32.xlu0 %v735
        %v737 = vpop.xlane.xlu0 %736
        %v738 = vadd.f32 %v576, %v577
        %739 = vadd.xlane.f32.xlu0 %v738
        %v740 = vpop.xlane.xlu0 %739
        %v741 = vadd.f32 %v578, %v579
        %742 = vadd.xlane.f32.xlu0 %v741
        %v743 = vpop.xlane.xlu0 %742
        %v744 = vadd.f32 %v580, %v581
        %745 = vadd.xlane.f32.xlu0 %v744
        %v746 = vpop.xlane.xlu0 %745
        %v747 = vadd.f32 %v582, %v583
        %748 = vadd.xlane.f32.xlu0 %v747
        %v749 = vpop.xlane.xlu0 %748
        %v750 = vadd.f32 %v584, %v585
        %751 = vadd.xlane.f32.xlu0 %v750
        %v752 = vpop.xlane.xlu0 %751
        %v753 = vadd.f32 %v586, %v587
        %754 = vadd.xlane.f32.xlu0 %v753
        %v755 = vpop.xlane.xlu0 %754
        %v756 = vadd.f32 %v588, %v589
        %757 = vadd.xlane.f32.xlu0 %v756
        %v758 = vpop.xlane.xlu0 %757
        %v759 = vadd.f32 %v590, %v591
        %760 = vadd.xlane.f32.xlu0 %v759
        %v761 = vpop.xlane.xlu0 %760
        %v762 = vadd.f32 %v592, %v593
        %763 = vadd.xlane.f32.xlu0 %v762
        %v764 = vpop.xlane.xlu0 %763
        %v765 = vadd.f32 %v594, %v595
        %766 = vadd.xlane.f32.xlu0 %v765
        %v767 = vpop.xlane.xlu0 %766
        %v768 = vadd.f32 %v596, %v597
        %769 = vadd.xlane.f32.xlu0 %v768
        %v770 = vpop.xlane.xlu0 %769
        %v771 = vadd.f32 %v598, %v599
        %772 = vadd.xlane.f32.xlu0 %v771
        %v773 = vpop.xlane.xlu0 %772
        %v774 = vadd.f32 %v600, %v601
        %775 = vadd.xlane.f32.xlu0 %v774
        %v776 = vpop.xlane.xlu0 %775
        %v777 = vadd.f32 %v602, %v603
        %778 = vadd.xlane.f32.xlu0 %v777
        %v779 = vpop.xlane.xlu0 %778
        %v780 = vadd.f32 %v604, %v605
        %781 = vadd.xlane.f32.xlu0 %v780
        %v782 = vpop.xlane.xlu0 %781
        %v783 = vadd.f32 %v606, %v607
        %784 = vadd.xlane.f32.xlu0 %v783
        %v785 = vpop.xlane.xlu0 %784
        %v786 = vadd.f32 %v608, %v609
        %787 = vadd.xlane.f32.xlu0 %v786
        %v788 = vpop.xlane.xlu0 %787
        %v789 = vadd.f32 %v610, %v611
        %790 = vadd.xlane.f32.xlu0 %v789
        %v791 = vpop.xlane.xlu0 %790
        %v792 = vadd.f32 %v612, %v613
        %793 = vadd.xlane.f32.xlu0 %v792
        %v794 = vpop.xlane.xlu0 %793
        %v795 = vadd.f32 %v614, %v615
        %796 = vadd.xlane.f32.xlu0 %v795
        %v797 = vpop.xlane.xlu0 %796
        %v798 = vadd.f32 %v616, %v617
        %799 = vadd.xlane.f32.xlu0 %v798
        %v800 = vpop.xlane.xlu0 %799
        %v801 = vadd.f32 %v618, %v619
        %802 = vadd.xlane.f32.xlu0 %v801
        %v803 = vpop.xlane.xlu0 %802
        %v804 = vadd.f32 %v620, %v621
        %805 = vadd.xlane.f32.xlu0 %v804
        %v806 = vpop.xlane.xlu0 %805
        %v807 = vadd.f32 %v622, %v623
        %808 = vadd.xlane.f32.xlu0 %v807
        %v809 = vpop.xlane.xlu0 %808
        %v810 = vadd.f32 %v624, %v625
        %811 = vadd.xlane.f32.xlu0 %v810
        %v812 = vpop.xlane.xlu0 %811
        %v813 = vadd.f32 %v626, %v627
        %814 = vadd.xlane.f32.xlu0 %v813
        %v815 = vpop.xlane.xlu0 %814
        %v816 = vadd.f32 %v628, %v629
        %817 = vadd.xlane.f32.xlu0 %v816
        %v818 = vpop.xlane.xlu0 %817
        %v819 = vadd.f32 %v630, %v631
        %820 = vadd.xlane.f32.xlu0 %v819
        %v821 = vpop.xlane.xlu0 %820
        %v822 = vadd.f32 %v632, %v633
        %823 = vadd.xlane.f32.xlu0 %v822
        %v824 = vpop.xlane.xlu0 %823
        %v825 = vadd.f32 %v634, %v635
        %826 = vadd.xlane.f32.xlu0 %v825
        %v827 = vpop.xlane.xlu0 %826
        %v828 = vmax.f32 %v638, 1e-24
        %v829 = vmax.f32 %v641, 1e-24
        %v830 = vmax.f32 %v644, 1e-24
        %v831 = vmax.f32 %v647, 1e-24
        %v832 = vmax.f32 %v650, 1e-24
        %v833 = vmax.f32 %v653, 1e-24
        %v834 = vmax.f32 %v656, 1e-24
        %v835 = vmax.f32 %v659, 1e-24
        %v836 = vmax.f32 %v662, 1e-24
        %v837 = vmax.f32 %v665, 1e-24
        %v838 = vmax.f32 %v668, 1e-24
        %v839 = vmax.f32 %v671, 1e-24
        %v840 = vmax.f32 %v674, 1e-24
        %v841 = vmax.f32 %v677, 1e-24
        %v842 = vmax.f32 %v680, 1e-24
        %v843 = vmax.f32 %v683, 1e-24
        %v844 = vmax.f32 %v686, 1e-24
        %v845 = vmax.f32 %v689, 1e-24
        %v846 = vmax.f32 %v692, 1e-24
        %v847 = vmax.f32 %v695, 1e-24
        %v848 = vmax.f32 %v698, 1e-24
        %v849 = vmax.f32 %v701, 1e-24
        %v850 = vmax.f32 %v704, 1e-24
        %v851 = vmax.f32 %v707, 1e-24
        %v852 = vmax.f32 %v710, 1e-24
        %v853 = vmax.f32 %v713, 1e-24
        %v854 = vmax.f32 %v716, 1e-24
        %v855 = vmax.f32 %v719, 1e-24
        %v856 = vmax.f32 %v722, 1e-24
        %v857 = vmax.f32 %v725, 1e-24
        %v858 = vmax.f32 %v728, 1e-24
        %v859 = vmax.f32 %v731, 1e-24
        %v860 = vmax.f32 %v734, 1e-24
        %v861 = vmax.f32 %v737, 1e-24
        %v862 = vmax.f32 %v740, 1e-24
        %v863 = vmax.f32 %v743, 1e-24
        %v864 = vmax.f32 %v746, 1e-24
        %v865 = vmax.f32 %v749, 1e-24
        %v866 = vmax.f32 %v752, 1e-24
        %v867 = vmax.f32 %v755, 1e-24
        %v868 = vmax.f32 %v758, 1e-24
        %v869 = vmax.f32 %v761, 1e-24
        %v870 = vmax.f32 %v764, 1e-24
        %v871 = vmax.f32 %v767, 1e-24
        %v872 = vmax.f32 %v770, 1e-24
        %v873 = vmax.f32 %v773, 1e-24
        %v874 = vmax.f32 %v776, 1e-24
        %v875 = vmax.f32 %v779, 1e-24
        %v876 = vmax.f32 %v782, 1e-24
        %v877 = vmax.f32 %v785, 1e-24
        %v878 = vmax.f32 %v788, 1e-24
        %v879 = vmax.f32 %v791, 1e-24
        %v880 = vmax.f32 %v794, 1e-24
        %v881 = vmax.f32 %v797, 1e-24
        %v882 = vmax.f32 %v800, 1e-24
        %v883 = vmax.f32 %v803, 1e-24
        %v884 = vmax.f32 %v806, 1e-24
        %v885 = vmax.f32 %v809, 1e-24
        %v886 = vmax.f32 %v812, 1e-24
        %v887 = vmax.f32 %v815, 1e-24
        %v888 = vmax.f32 %v818, 1e-24
        %v889 = vmax.f32 %v821, 1e-24
        %v890 = vmax.f32 %v824, 1e-24
        %v891 = vmax.f32 %v827, 1e-24
        %v892 = vrsqrt.pop %v828
        %v893 = vrsqrt.pop %v829
        %v894 = vrsqrt.pop %v830
        %v895 = vrsqrt.pop %v831
        %v896 = vrsqrt.pop %v832
        %v897 = vrsqrt.pop %v833
        %v898 = vrsqrt.pop %v834
        %v899 = vrsqrt.pop %v835
        %v900 = vrsqrt.pop %v836
        %v901 = vrsqrt.pop %v837
        %v902 = vrsqrt.pop %v838
        %v903 = vrsqrt.pop %v839
        %v904 = vrsqrt.pop %v840
        %v905 = vrsqrt.pop %v841
        %v906 = vrsqrt.pop %v842
        %v907 = vrsqrt.pop %v843
        %v908 = vrsqrt.pop %v844
        %v909 = vrsqrt.pop %v845
        %v910 = vrsqrt.pop %v846
        %v911 = vrsqrt.pop %v847
        %v912 = vrsqrt.pop %v848
        %v913 = vrsqrt.pop %v849
        %v914 = vrsqrt.pop %v850
        %v915 = vrsqrt.pop %v851
        %v916 = vrsqrt.pop %v852
        %v917 = vrsqrt.pop %v853
        %v918 = vrsqrt.pop %v854
        %v919 = vrsqrt.pop %v855
        %v920 = vrsqrt.pop %v856
        %v921 = vrsqrt.pop %v857
        %v922 = vrsqrt.pop %v858
        %v923 = vrsqrt.pop %v859
        %v924 = vrsqrt.pop %v860
        %v925 = vrsqrt.pop %v861
        %v926 = vrsqrt.pop %v862
        %v927 = vrsqrt.pop %v863
        %v928 = vrsqrt.pop %v864
        %v929 = vrsqrt.pop %v865
        %v930 = vrsqrt.pop %v866
        %v931 = vrsqrt.pop %v867
        %v932 = vrsqrt.pop %v868
        %v933 = vrsqrt.pop %v869
        %v934 = vrsqrt.pop %v870
        %v935 = vrsqrt.pop %v871
        %v936 = vrsqrt.pop %v872
        %v937 = vrsqrt.pop %v873
        %v938 = vrsqrt.pop %v874
        %v939 = vrsqrt.pop %v875
        %v940 = vrsqrt.pop %v876
        %v941 = vrsqrt.pop %v877
        %v942 = vrsqrt.pop %v878
        %v943 = vrsqrt.pop %v879
        %v944 = vrsqrt.pop %v880
        %v945 = vrsqrt.pop %v881
        %v946 = vrsqrt.pop %v882
        %v947 = vrsqrt.pop %v883
        %v948 = vrsqrt.pop %v884
        %v949 = vrsqrt.pop %v885
        %v950 = vrsqrt.pop %v886
        %v951 = vrsqrt.pop %v887
        %v952 = vrsqrt.pop %v888
        %v953 = vrsqrt.pop %v889
        %v954 = vrsqrt.pop %v890
        %v955 = vrsqrt.pop %v891
        %v956 = vmul.f32 %v380, %v892
        %v957 = vmul.f32 %v381, %v892
        %v958 = vmul.f32 %v382, %v893
        %v959 = vmul.f32 %v383, %v893
        %v960 = vmul.f32 %v384, %v894
        %v961 = vmul.f32 %v385, %v894
        %v962 = vmul.f32 %v386, %v895
        %v963 = vmul.f32 %v387, %v895
        %v964 = vmul.f32 %v388, %v896
        %v965 = vmul.f32 %v389, %v896
        %v966 = vmul.f32 %v390, %v897
        %v967 = vmul.f32 %v391, %v897
        %v968 = vmul.f32 %v392, %v898
        %v969 = vmul.f32 %v393, %v898
        %v970 = vmul.f32 %v394, %v899
        %v971 = vmul.f32 %v395, %v899
        %v972 = vmul.f32 %v396, %v900
        %v973 = vmul.f32 %v397, %v900
        %v974 = vmul.f32 %v398, %v901
        %v975 = vmul.f32 %v399, %v901
        %v976 = vmul.f32 %v400, %v902
        %v977 = vmul.f32 %v401, %v902
        %v978 = vmul.f32 %v402, %v903
        %v979 = vmul.f32 %v403, %v903
        %v980 = vmul.f32 %v404, %v904
        %v981 = vmul.f32 %v405, %v904
        %v982 = vmul.f32 %v406, %v905
        %v983 = vmul.f32 %v407, %v905
        %v984 = vmul.f32 %v408, %v906
        %v985 = vmul.f32 %v409, %v906
        %v986 = vmul.f32 %v410, %v907
        %v987 = vmul.f32 %v411, %v907
        %v988 = vmul.f32 %v412, %v908
        %v989 = vmul.f32 %v413, %v908
        %v990 = vmul.f32 %v414, %v909
        %v991 = vmul.f32 %v415, %v909
        %v992 = vmul.f32 %v416, %v910
        %v993 = vmul.f32 %v417, %v910
        %v994 = vmul.f32 %v418, %v911
        %v995 = vmul.f32 %v419, %v911
        %v996 = vmul.f32 %v420, %v912
        %v997 = vmul.f32 %v421, %v912
        %v998 = vmul.f32 %v422, %v913
        %v999 = vmul.f32 %v423, %v913
        %v1000 = vmul.f32 %v424, %v914
        %v1001 = vmul.f32 %v425, %v914
        %v1002 = vmul.f32 %v426, %v915
        %v1003 = vmul.f32 %v427, %v915
        %v1004 = vmul.f32 %v428, %v916
        %v1005 = vmul.f32 %v429, %v916
        %v1006 = vmul.f32 %v430, %v917
        %v1007 = vmul.f32 %v431, %v917
        %v1008 = vmul.f32 %v432, %v918
        %v1009 = vmul.f32 %v433, %v918
        %v1010 = vmul.f32 %v434, %v919
        %v1011 = vmul.f32 %v435, %v919
        %v1012 = vmul.f32 %v436, %v920
        %v1013 = vmul.f32 %v437, %v920
        %v1014 = vmul.f32 %v438, %v921
        %v1015 = vmul.f32 %v439, %v921
        %v1016 = vmul.f32 %v440, %v922
        %v1017 = vmul.f32 %v441, %v922
        %v1018 = vmul.f32 %v442, %v923
        %v1019 = vmul.f32 %v443, %v923
        %v1020 = vmul.f32 %v444, %v924
        %v1021 = vmul.f32 %v445, %v924
        %v1022 = vmul.f32 %v446, %v925
        %v1023 = vmul.f32 %v447, %v925
        %v1024 = vmul.f32 %v448, %v926
        %v1025 = vmul.f32 %v449, %v926
        %v1026 = vmul.f32 %v450, %v927
        %v1027 = vmul.f32 %v451, %v927
        %v1028 = vmul.f32 %v452, %v928
        %v1029 = vmul.f32 %v453, %v928
        %v1030 = vmul.f32 %v454, %v929
        %v1031 = vmul.f32 %v455, %v929
        %v1032 = vmul.f32 %v456, %v930
        %v1033 = vmul.f32 %v457, %v930
        %v1034 = vmul.f32 %v458, %v931
        %v1035 = vmul.f32 %v459, %v931
        %v1036 = vmul.f32 %v460, %v932
        %v1037 = vmul.f32 %v461, %v932
        %v1038 = vmul.f32 %v462, %v933
        %v1039 = vmul.f32 %v463, %v933
        %v1040 = vmul.f32 %v464, %v934
        %v1041 = vmul.f32 %v465, %v934
        %v1042 = vmul.f32 %v466, %v935
        %v1043 = vmul.f32 %v467, %v935
        %v1044 = vmul.f32 %v468, %v936
        %v1045 = vmul.f32 %v469, %v936
        %v1046 = vmul.f32 %v470, %v937
        %v1047 = vmul.f32 %v471, %v937
        %v1048 = vmul.f32 %v472, %v938
        %v1049 = vmul.f32 %v473, %v938
        %v1050 = vmul.f32 %v474, %v939
        %v1051 = vmul.f32 %v475, %v939
        %v1052 = vmul.f32 %v476, %v940
        %v1053 = vmul.f32 %v477, %v940
        %v1054 = vmul.f32 %v478, %v941
        %v1055 = vmul.f32 %v479, %v941
        %v1056 = vmul.f32 %v480, %v942
        %v1057 = vmul.f32 %v481, %v942
        %v1058 = vmul.f32 %v482, %v943
        %v1059 = vmul.f32 %v483, %v943
        %v1060 = vmul.f32 %v484, %v944
        %v1061 = vmul.f32 %v485, %v944
        %v1062 = vmul.f32 %v486, %v945
        %v1063 = vmul.f32 %v487, %v945
        %v1064 = vmul.f32 %v488, %v946
        %v1065 = vmul.f32 %v489, %v946
        %v1066 = vmul.f32 %v490, %v947
        %v1067 = vmul.f32 %v491, %v947
        %v1068 = vmul.f32 %v492, %v948
        %v1069 = vmul.f32 %v493, %v948
        %v1070 = vmul.f32 %v494, %v949
        %v1071 = vmul.f32 %v495, %v949
        %v1072 = vmul.f32 %v496, %v950
        %v1073 = vmul.f32 %v497, %v950
        %v1074 = vmul.f32 %v498, %v951
        %v1075 = vmul.f32 %v499, %v951
        %v1076 = vmul.f32 %v500, %v952
        %v1077 = vmul.f32 %v501, %v952
        %v1078 = vmul.f32 %v502, %v953
        %v1079 = vmul.f32 %v503, %v953
        %v1080 = vmul.f32 %v504, %v954
        %v1081 = vmul.f32 %v505, %v954
        %v1082 = vmul.f32 %v506, %v955
        %v1083 = vmul.f32 %v507, %v955
        %v1084 = vpack.c.bf16 %v958, %v956
        %v1085 = vpack.c.bf16 %v959, %v957
        %v1086 = vpack.c.bf16 %v962, %v960
        %v1087 = vpack.c.bf16 %v963, %v961
        %v1088 = vpack.c.bf16 %v966, %v964
        %v1089 = vpack.c.bf16 %v967, %v965
        %v1090 = vpack.c.bf16 %v970, %v968
        %v1091 = vpack.c.bf16 %v971, %v969
        %v1092 = vpack.c.bf16 %v974, %v972
        %v1093 = vpack.c.bf16 %v975, %v973
        %v1094 = vpack.c.bf16 %v978, %v976
        %v1095 = vpack.c.bf16 %v979, %v977
        %v1096 = vpack.c.bf16 %v982, %v980
        %v1097 = vpack.c.bf16 %v983, %v981
        %v1098 = vpack.c.bf16 %v986, %v984
        %v1099 = vpack.c.bf16 %v987, %v985
        %v1100 = vpack.c.bf16 %v990, %v988
        %v1101 = vpack.c.bf16 %v991, %v989
        %v1102 = vpack.c.bf16 %v994, %v992
        %v1103 = vpack.c.bf16 %v995, %v993
        %v1104 = vpack.c.bf16 %v998, %v996
        %v1105 = vpack.c.bf16 %v999, %v997
        %v1106 = vpack.c.bf16 %v1002, %v1000
        %v1107 = vpack.c.bf16 %v1003, %v1001
        %v1108 = vpack.c.bf16 %v1006, %v1004
        %v1109 = vpack.c.bf16 %v1007, %v1005
        %v1110 = vpack.c.bf16 %v1010, %v1008
        %v1111 = vpack.c.bf16 %v1011, %v1009
        %v1112 = vpack.c.bf16 %v1014, %v1012
        %v1113 = vpack.c.bf16 %v1015, %v1013
        %v1114 = vpack.c.bf16 %v1018, %v1016
        %v1115 = vpack.c.bf16 %v1019, %v1017
        %v1116 = vpack.c.bf16 %v1022, %v1020
        %v1117 = vpack.c.bf16 %v1023, %v1021
        %v1118 = vpack.c.bf16 %v1026, %v1024
        %v1119 = vpack.c.bf16 %v1027, %v1025
        %v1120 = vpack.c.bf16 %v1030, %v1028
        %v1121 = vpack.c.bf16 %v1031, %v1029
        %v1122 = vpack.c.bf16 %v1034, %v1032
        %v1123 = vpack.c.bf16 %v1035, %v1033
        %v1124 = vpack.c.bf16 %v1038, %v1036
        %v1125 = vpack.c.bf16 %v1039, %v1037
        %v1126 = vpack.c.bf16 %v1042, %v1040
        %v1127 = vpack.c.bf16 %v1043, %v1041
        %v1128 = vpack.c.bf16 %v1046, %v1044
        %v1129 = vpack.c.bf16 %v1047, %v1045
        %v1130 = vpack.c.bf16 %v1050, %v1048
        %v1131 = vpack.c.bf16 %v1051, %v1049
        %v1132 = vpack.c.bf16 %v1054, %v1052
        %v1133 = vpack.c.bf16 %v1055, %v1053
        %v1134 = vpack.c.bf16 %v1058, %v1056
        %v1135 = vpack.c.bf16 %v1059, %v1057
        %v1136 = vpack.c.bf16 %v1062, %v1060
        %v1137 = vpack.c.bf16 %v1063, %v1061
        %v1138 = vpack.c.bf16 %v1066, %v1064
        %v1139 = vpack.c.bf16 %v1067, %v1065
        %v1140 = vpack.c.bf16 %v1070, %v1068
        %v1141 = vpack.c.bf16 %v1071, %v1069
        %v1142 = vpack.c.bf16 %v1074, %v1072
        %v1143 = vpack.c.bf16 %v1075, %v1073
        %v1144 = vpack.c.bf16 %v1078, %v1076
        %v1145 = vpack.c.bf16 %v1079, %v1077
        %v1146 = vpack.c.bf16 %v1082, %v1080
        %v1147 = vpack.c.bf16 %v1083, %v1081
        %v1148 = vld [vmem:[#allocation5] sm:$0xff]
        %v1149 = vld [vmem:[#allocation5 + $0x8] sm:$0xff]
        %v1152 = vunpack.c.l.b16 %v1148
        %v1153 = vunpack.c.h.b16 %v1148
        %v1154 = vunpack.c.l.b16 %v1149
        %v1155 = vunpack.c.h.b16 %v1149
        %v1156 = vpack.c.b16 %v1154, %v1152
        %v1157 = vpack.c.b16 %v1155, %v1153
        %1160 = vmatprep.subr.bf16.mxu0 %v1085
        %1161 = vmatpush1.bf16.xpose.msra.mxu0 %v1084
        %1162 = vmatprep.subr.bf16.mxu0 %v1087
        %1163 = vmatpush1.bf16.xpose.msra.mxu0 %v1086
        %1164 = vmatprep.subr.bf16.mxu0 %v1089
        %1165 = vmatpush1.bf16.xpose.msra.mxu0 %v1088
        %1166 = vmatprep.subr.bf16.mxu0 %v1091
        %1167 = vmatpush1.bf16.xpose.msra.mxu0 %v1090
        %1168 = vmatprep.subr.bf16.mxu0 %v1093
        %1169 = vmatpush1.bf16.xpose.msra.mxu0 %v1092
        %1170 = vmatprep.subr.bf16.mxu0 %v1095
        %1171 = vmatpush1.bf16.xpose.msra.mxu0 %v1094
        %1172 = vmatprep.subr.bf16.mxu0 %v1097
        %1173 = vmatpush1.bf16.xpose.msra.mxu0 %v1096
        %1174 = vmatprep.subr.bf16.mxu0 %v1099
        %1175 = vmatpush1.bf16.xpose.msra.mxu0 %v1098
        %1176 = vmatprep.subr.bf16.mxu0 %v1101
        %1177 = vmatpush1.bf16.xpose.msra.mxu0 %v1100
        %1178 = vmatprep.subr.bf16.mxu0 %v1103
        %1179 = vmatpush1.bf16.xpose.msra.mxu0 %v1102
        %1180 = vmatprep.subr.bf16.mxu0 %v1105
        %1181 = vmatpush1.bf16.xpose.msra.mxu0 %v1104
        %1182 = vmatprep.subr.bf16.mxu0 %v1107
        %1183 = vmatpush1.bf16.xpose.msra.mxu0 %v1106
        %1184 = vmatprep.subr.bf16.mxu0 %v1109
        %1185 = vmatpush1.bf16.xpose.msra.mxu0 %v1108
        %1186 = vmatprep.subr.bf16.mxu0 %v1111
        %1187 = vmatpush1.bf16.xpose.msra.mxu0 %v1110
        %1188 = vmatprep.subr.bf16.mxu0 %v1113
        %1189 = vmatpush1.bf16.xpose.msra.mxu0 %v1112
        %1190 = vmatprep.subr.bf16.mxu0 %v1115
        %1191 = vmatpush1.bf16.xpose.msra.mxu0 %v1114
        %1192 = vmatprep.mubr.bf16.mxu0 %v1157
        %1193 = vmatmul.mubr.bf16.gmra.mrb[0].mxu0 %v1156
        %v1194 = vpop.f32.mrb[0].mxu0
        %v1195 = vadd.f32 0.0, %v1194
        %v1196 = vpop.f32.mrb[0].mxu0
        %v1197 = vadd.f32 0.0, %v1196
        %v1198 = vpop.f32.mrb[0].mxu0
        %v1199 = vadd.f32 0.0, %v1198
        %v1200 = vpop.f32.mrb[0].mxu0
        %v1201 = vadd.f32 0.0, %v1200
        %1202 = vdwg.mxu0
        %1203 = vmatprep.subr.bf16.mxu0 %v1117
        %1204 = vmatpush1.bf16.xpose.msra.mxu0 %v1116
        %1205 = vmatprep.subr.bf16.mxu0 %v1119
        %1206 = vmatpush1.bf16.xpose.msra.mxu0 %v1118
        %1207 = vmatprep.subr.bf16.mxu0 %v1121
        %1208 = vmatpush1.bf16.xpose.msra.mxu0 %v1120
        %1209 = vmatprep.subr.bf16.mxu0 %v1123
        %1210 = vmatpush1.bf16.xpose.msra.mxu0 %v1122
        %1211 = vmatprep.subr.bf16.mxu0 %v1125
        %1212 = vmatpush1.bf16.xpose.msra.mxu0 %v1124
        %1213 = vmatprep.subr.bf16.mxu0 %v1127
        %1214 = vmatpush1.bf16.xpose.msra.mxu0 %v1126
        %1215 = vmatprep.subr.bf16.mxu0 %v1129
        %1216 = vmatpush1.bf16.xpose.msra.mxu0 %v1128
        %1217 = vmatprep.subr.bf16.mxu0 %v1131
        %1218 = vmatpush1.bf16.xpose.msra.mxu0 %v1130
        %1219 = vmatprep.subr.bf16.mxu0 %v1133
        %1220 = vmatpush1.bf16.xpose.msra.mxu0 %v1132
        %1221 = vmatprep.subr.bf16.mxu0 %v1135
        %1222 = vmatpush1.bf16.xpose.msra.mxu0 %v1134
        %1223 = vmatprep.subr.bf16.mxu0 %v1137
        %1224 = vmatpush1.bf16.xpose.msra.mxu0 %v1136
        %1225 = vmatprep.subr.bf16.mxu0 %v1139
        %1226 = vmatpush1.bf16.xpose.msra.mxu0 %v1138
        %1227 = vmatprep.subr.bf16.mxu0 %v1141
        %1228 = vmatpush1.bf16.xpose.msra.mxu0 %v1140
        %1229 = vmatprep.subr.bf16.mxu0 %v1143
        %1230 = vmatpush1.bf16.xpose.msra.mxu0 %v1142
        %1231 = vmatprep.subr.bf16.mxu0 %v1145
        %1232 = vmatpush1.bf16.xpose.msra.mxu0 %v1144
        %1233 = vmatprep.subr.bf16.mxu0 %v1147
        %1234 = vmatpush1.bf16.xpose.msra.mxu0 %v1146
        %1235 = vmatprep.mubr.bf16.mxu0 %v1157
        %1236 = vmatmul.mubr.bf16.gmra.mrb[0].mxu0 %v1156
        %v1237 = vpop.f32.mrb[0].mxu0
        %v1238 = vadd.f32 0.0, %v1237
        %v1239 = vpop.f32.mrb[0].mxu0
        %v1240 = vadd.f32 0.0, %v1239
        %v1241 = vpop.f32.mrb[0].mxu0
        %v1242 = vadd.f32 0.0, %v1241
        %v1243 = vpop.f32.mrb[0].mxu0
        %v1244 = vadd.f32 0.0, %v1243
        %1245 = vdwg.mxu0
        %v1246 = vmax.f32 %v1195, -1.0
        %v1247 = vmax.f32 %v1197, -1.0
        %v1248 = vmax.f32 %v1238, -1.0
        %v1249 = vmax.f32 %v1240, -1.0
        %v1250 = vmax.f32 %v1199, -1.0
        %v1251 = vmax.f32 %v1201, -1.0
        %v1252 = vmax.f32 %v1242, -1.0
        %v1253 = vmax.f32 %v1244, -1.0
        %v1254 = vmin.f32 %v1246, 1.0
        %v1255 = vmin.f32 %v1247, 1.0
        %v1256 = vmin.f32 %v1248, 1.0
        %v1257 = vmin.f32 %v1249, 1.0
        %v1258 = vmin.f32 %v1250, 1.0
        %v1259 = vmin.f32 %v1251, 1.0
        %v1260 = vmin.f32 %v1252, 1.0
        %v1261 = vmin.f32 %v1253, 1.0
        %s1262 = smul.u32 %s29, 2
        %s1263 = sadd.s32 %s1262, %s30
        %s1264 = smul.u32 %s1263, 512
        %v1265 = vlaneseq
        %v1266 = vand.u32 %v1265, 127
        %v1267 = vadd.s32 %v1266, 128
        %v1268 = vadd.s32 %v1266, 256
        %v1269 = vadd.s32 %v1266, 384
        %v1270 = vstv %s1264
        %v1271 = vadd.s32 %v1270, %v1266
        %v1272 = vadd.s32 %v1270, %v1267
        %v1273 = vadd.s32 %v1270, %v1268
        %v1274 = vadd.s32 %v1270, %v1269
        %v1275 = vld [vmem:[%s1] sm:$0xff]
        %v1276 = vld [vmem:[%s1 + $0x8] sm:$0xff]
        %1277 = vset.pattern.permute.xlu0 0
        %1278 = vperm.xlu0 %1277, %v1275
        %v1279 = vpop.permute.xlu0 %1278
        %1280 = vset.pattern.permute.xlu0 0
        %1281 = vperm.xlu0 %1280, %v1276
        %v1282 = vpop.permute.xlu0 %1281
        %vm1283 = vcmp.eq.s32.totalorder %v1271, %v1279
        %vm1284 = vcmp.eq.s32.totalorder %v1272, %v1279
        %vm1285 = vcmp.eq.s32.totalorder %v1273, %v1279
        %vm1286 = vcmp.eq.s32.totalorder %v1274, %v1279
        %vm1287 = vcmp.eq.s32.totalorder %v1271, %v1282
        %vm1288 = vcmp.eq.s32.totalorder %v1272, %v1282
        %vm1289 = vcmp.eq.s32.totalorder %v1273, %v1282
        %vm1290 = vcmp.eq.s32.totalorder %v1274, %v1282
        %v1291 = vld [vmem:[#allocation4] sm:$0x1]
        %v1292 = vld [vmem:[%s2] sm:$0xff]
        %v1293 = vld [vmem:[%s2 + $0x8] sm:$0xff]
        %1295 = vset.pattern.permute.xlu0 0
        %1296 = vperm.xlu0 %1295, %v1292
        %v1297 = vpop.permute.xlu0 %1296
        %1300 = vset.pattern.permute.xlu0 0
        %1301 = vperm.xlu0 %1300, %v1293
        %v1302 = vpop.permute.xlu0 %1301
        %vm1304 = vcmp.gt.f32.partialorder %v1254, %v1297
        %vm1305 = vcmp.gt.f32.partialorder %v1255, %v1297
        %vm1306 = vcmp.gt.f32.partialorder %v1256, %v1297
        %vm1307 = vcmp.gt.f32.partialorder %v1257, %v1297
        %vm1308 = vcmp.gt.f32.partialorder %v1258, %v1302
        %vm1309 = vcmp.gt.f32.partialorder %v1259, %v1302
        %vm1310 = vcmp.gt.f32.partialorder %v1260, %v1302
        %vm1311 = vcmp.gt.f32.partialorder %v1261, %v1302
        %v1313 = vlaneseq
        %v1314 = vshrl.u32 %v1313, 7
        %v1315 = vsub.s32 0, %v1314
        %v1316 = vrot.slane %v1291, %v1315
        %1317 = vset.pattern.permute.xlu0 0
        %1318 = vperm.xlu0 %1317, %v1316
        %v1319 = vpop.permute.xlu0 %1318
        %v1321 = vadd.f32 %v1319, %v1254
        %v1322 = vadd.f32 %v1319, %v1255
        %v1323 = vadd.f32 %v1319, %v1256
        %v1324 = vadd.f32 %v1319, %v1257
        %v1325 = vadd.f32 %v1319, %v1258
        %v1326 = vadd.f32 %v1319, %v1259
        %v1327 = vadd.f32 %v1319, %v1260
        %v1328 = vadd.f32 %v1319, %v1261
        %v1329 = vmul.f32 %v1254, %v1321
        %v1330 = vmul.f32 %v1255, %v1322
        %v1331 = vmul.f32 %v1256, %v1323
        %v1332 = vmul.f32 %v1257, %v1324
        %v1333 = vmul.f32 %v1258, %v1325
        %v1334 = vmul.f32 %v1259, %v1326
        %v1335 = vmul.f32 %v1260, %v1327
        %v1336 = vmul.f32 %v1261, %v1328
        %v1337 = vsel %vm1304, %v1329, %v1254
        %v1338 = vsel %vm1305, %v1330, %v1255
        %v1339 = vsel %vm1306, %v1331, %v1256
        %v1340 = vsel %vm1307, %v1332, %v1257
        %v1341 = vsel %vm1308, %v1333, %v1258
        %v1342 = vsel %vm1309, %v1334, %v1259
        %v1343 = vsel %vm1310, %v1335, %v1260
        %v1344 = vsel %vm1311, %v1336, %v1261
        %v1345 = vld [vmem:[%s3] sm:$0xff]
        %v1346 = vld [vmem:[%s3 + $0x8] sm:$0xff]
        %1348 = vset.pattern.permute.xlu0 0
        %1349 = vperm.xlu0 %1348, %v1345
        %v1350 = vpop.permute.xlu0 %1349
        %1353 = vset.pattern.permute.xlu0 0
        %1354 = vperm.xlu0 %1353, %v1346
        %v1355 = vpop.permute.xlu0 %1354
        %v1357 = vsel %vm1283, %v1350, %v1337
        %v1358 = vsel %vm1284, %v1350, %v1338
        %v1359 = vsel %vm1285, %v1350, %v1339
        %v1360 = vsel %vm1286, %v1350, %v1340
        %v1361 = vsel %vm1287, %v1355, %v1341
        %v1362 = vsel %vm1288, %v1355, %v1342
        %v1363 = vsel %vm1289, %v1355, %v1343
        %v1364 = vsel %vm1290, %v1355, %v1344
        %v1365 = vmul.f32 %v1357, 30.0
        %v1366 = vmul.f32 %v1358, 30.0
        %v1367 = vmul.f32 %v1359, 30.0
        %v1368 = vmul.f32 %v1360, 30.0
        %v1369 = vmul.f32 %v1361, 30.0
        %v1370 = vmul.f32 %v1362, 30.0
        %v1371 = vmul.f32 %v1363, 30.0
        %v1372 = vmul.f32 %v1364, 30.0
        %vm1373 = vcmp.lt.s32.totalorder %v1271, 1500
        %vm1374 = vcmp.lt.s32.totalorder %v1272, 1500
        %vm1375 = vcmp.lt.s32.totalorder %v1273, 1500
        %vm1376 = vcmp.lt.s32.totalorder %v1274, 1500
        %v1377 = vsel %vm1373, %v1365, -1e+30
        %v1378 = vsel %vm1374, %v1366, -1e+30
        %v1379 = vsel %vm1375, %v1367, -1e+30
        %v1380 = vsel %vm1376, %v1368, -1e+30
        %v1381 = vsel %vm1373, %v1369, -1e+30
        %v1382 = vsel %vm1374, %v1370, -1e+30
        %v1383 = vsel %vm1375, %v1371, -1e+30
        %v1384 = vsel %vm1376, %v1372, -1e+30
        %v1385 = vld [vmem:[#allocation2] sm:$0xff]
        %v1386 = vld [vmem:[#allocation2 + $0x8] sm:$0xff]
        %v1387 = vmax.f32 %v1377, %v1379
        %v1388 = vmax.f32 %v1378, %v1380
        %v1389 = vmax.f32 %v1387, %v1388
        %1390 = vmax.xlane.f32.xlu0 %v1389
        %v1391 = vpop.xlane.xlu0 %1390
        %v1392 = vmax.f32 %v1381, %v1383
        %v1393 = vmax.f32 %v1382, %v1384
        %v1394 = vmax.f32 %v1392, %v1393
        %1395 = vmax.xlane.f32.xlu0 %v1394
        %v1396 = vpop.xlane.xlu0 %1395
        %v1397 = vmax.f32 %v1385, %v1391
        %v1398 = vmax.f32 %v1386, %v1396
        %v1399 = vsub.f32 %v1385, %v1397
        %v1400 = vsub.f32 %v1386, %v1398
        %v1401 = vmul.f32 %v1399, 1.442695
        %v1402 = vpow.pop %v1401
        %v1403 = vmul.f32 %v1400, 1.442695
        %v1404 = vpow.pop %v1403
        %v1405 = vld [vmem:[#allocation3] sm:$0xff]
        %v1406 = vld [vmem:[#allocation3 + $0x8] sm:$0xff]
        %v1407 = vmul.f32 %v1402, %v1405
        %v1408 = vmul.f32 %v1404, %v1406
        %1410 = vset.pattern.permute.xlu0 0
        %1411 = vperm.xlu0 %1410, %v1397
        %v1412 = vpop.permute.xlu0 %1411
        %1415 = vset.pattern.permute.xlu0 0
        %1416 = vperm.xlu0 %1415, %v1398
        %v1417 = vpop.permute.xlu0 %1416
        %v1419 = vsub.f32 %v1377, %v1412
        %v1420 = vsub.f32 %v1378, %v1412
        %v1421 = vsub.f32 %v1379, %v1412
        %v1422 = vsub.f32 %v1380, %v1412
        %v1423 = vsub.f32 %v1381, %v1417
        %v1424 = vsub.f32 %v1382, %v1417
        %v1425 = vsub.f32 %v1383, %v1417
        %v1426 = vsub.f32 %v1384, %v1417
        %v1427 = vmul.f32 %v1419, 1.442695
        %v1428 = vpow.pop %v1427
        %v1429 = vmul.f32 %v1420, 1.442695
        %v1430 = vpow.pop %v1429
        %v1431 = vmul.f32 %v1421, 1.442695
        %v1432 = vpow.pop %v1431
        %v1433 = vmul.f32 %v1422, 1.442695
        %v1434 = vpow.pop %v1433
        %v1435 = vmul.f32 %v1423, 1.442695
        %v1436 = vpow.pop %v1435
        %v1437 = vmul.f32 %v1424, 1.442695
        %v1438 = vpow.pop %v1437
        %v1439 = vmul.f32 %v1425, 1.442695
        %v1440 = vpow.pop %v1439
        %v1441 = vmul.f32 %v1426, 1.442695
        %v1442 = vpow.pop %v1441
        %v1443 = vadd.f32 %v1428, %v1430
        %v1444 = vadd.f32 %v1443, %v1432
        %v1445 = vadd.f32 %v1444, %v1434
        %1446 = vadd.xlane.f32.xlu0 %v1445
        %v1447 = vpop.xlane.xlu0 %1446
        %v1448 = vadd.f32 %v1436, %v1438
        %v1449 = vadd.f32 %v1448, %v1440
        %v1450 = vadd.f32 %v1449, %v1442
        %1451 = vadd.xlane.f32.xlu0 %v1450
        %v1452 = vpop.xlane.xlu0 %1451
        %v1453 = vadd.f32 %v1407, %v1447
        %v1454 = vadd.f32 %v1408, %v1452
        %vm1455 = vcmask 7168
        %1456 = vst.msk [vmem:[#allocation3] sm:$0xff] %vm1455, %v1453
        %1457 = vst.msk [vmem:[#allocation3 + $0x8] sm:$0xff] %vm1455, %v1454
        %1458 = vst.msk [vmem:[#allocation2] sm:$0xff] %vm1455, %v1397
        %1459 = vst.msk [vmem:[#allocation2 + $0x8] sm:$0xff] %vm1455, %v1398
        %p1460 = scmp.eq.s32.totalorder %s30, 1
        // Predicated region
        $region57: #{tpu_custom_call.1} parent=43 // pred_check
          %p1461 = pneg %p1460
        $region58: #{tpu_custom_call.1} parent=43 // pred_check_branch
          %1463 = sbr.rel (%p1461) target = $region60
        $region59: #{tpu_custom_call.1} parent=43 // pred_region
          %v1464 = vld [vmem:[#allocation2] sm:$0xff]
          %v1465 = vld [vmem:[#allocation2 + $0x8] sm:$0xff]
          %1466 = vst.msk [vmem:[%s365] sm:$0xff] %vm1455, %v1464
          %1467 = vst.msk [vmem:[%s365 + $0x8] sm:$0xff] %vm1455, %v1465
          %v1468 = vld [vmem:[#allocation3] sm:$0xff]
          %v1469 = vld [vmem:[#allocation3 + $0x8] sm:$0xff]
          %1470 = vst.msk [vmem:[%s370] sm:$0xff] %vm1455, %v1468
          %1471 = vst.msk [vmem:[%s370 + $0x8] sm:$0xff] %vm1455, %v1469
        $region60: #{tpu_custom_call.1} parent=43 // pred_fallthru
          _
        %p1472 = scmp.lt.s32.totalorder %s29, 1
        %s1473 = scalar_select %p1472, %s29, 1
        %s1474 = smul.addr %s1473, 2
        %s1475 = smul.addr %s1474, 8
        %s1476 = scalar_lea.vmem %s6, %s1475
        %p1477 = scmp.lt.s32.totalorder %s29, 1
        %s1478 = scalar_select %p1477, %s29, 1
        %s1479 = smul.addr %s1478, 2
        %s1480 = smul.addr %s1479, 8
        %s1481 = scalar_lea.vmem %s7, %s1480
        // Predicated region
        $region61: #{tpu_custom_call.1} parent=43 // pred_check
          %p1482 = pneg %p194
        $region62: #{tpu_custom_call.1} parent=43 // pred_check_branch
          %1484 = sbr.rel (%p1482) target = $region64
        $region63: #{tpu_custom_call.1} parent=43 // pred_region
          _
        $region64: #{tpu_custom_call.1} parent=43 // pred_fallthru
          _
        // Predicated region
        $region65: #{tpu_custom_call.1} parent=43 // pred_check
          %p1485 = pneg %p220
        $region66: #{tpu_custom_call.1} parent=43 // pred_check_branch
          %1487 = sbr.rel (%p1485) target = $region68
        $region67: #{tpu_custom_call.1} parent=43 // pred_region
          _
        $region68: #{tpu_custom_call.1} parent=43 // pred_fallthru
          _
      $region44: #{tpu_custom_call.1} parent=5 // pred_fallthru
        _
      %p1488 = scmp.le.s32.totalorder 2, %s20
      // Predicated region
      $region69: #{tpu_custom_call.1} parent=5 // pred_check
        %p1489 = pneg %p1488
      $region70: #{tpu_custom_call.1} parent=5 // pred_check_branch
        %1491 = sbr.rel (%p1489) target = $region72
      $region71: #{tpu_custom_call.1} parent=5 // pred_region
        %s1492 = ssub.s32 %s20, 2
        // Predicated region
        $region73: #{tpu_custom_call.1} parent=71 // pred_check
          %p1493 = pneg %p200
        $region74: #{tpu_custom_call.1} parent=71 // pred_check_branch
          %1495 = sbr.rel (%p1493) target = $region76
        $region75: #{tpu_custom_call.1} parent=71 // pred_region
          %p1496 = scmp.lt.s32.totalorder %s31, 1
          %s1497 = scalar_select %p1496, %s31, 1
          %s1498 = smul.addr %s1497, 2
          %s1499 = smul.addr %s1498, 8
          %s1500 = scalar_lea.vmem %s6, %s1499
        $region76: #{tpu_custom_call.1} parent=71 // pred_fallthru
          _
        // Predicated region
        $region77: #{tpu_custom_call.1} parent=71 // pred_check
          %p1501 = pneg %p226
        $region78: #{tpu_custom_call.1} parent=71 // pred_check_branch
          %1503 = sbr.rel (%p1501) target = $region80
        $region79: #{tpu_custom_call.1} parent=71 // pred_region
          %p1504 = scmp.lt.s32.totalorder %s31, 1
          %s1505 = scalar_select %p1504, %s31, 1
          %s1506 = smul.addr %s1505, 2
          %s1507 = smul.addr %s1506, 8
          %s1508 = scalar_lea.vmem %s7, %s1507
        $region80: #{tpu_custom_call.1} parent=71 // pred_fallthru
          _
      $region72: #{tpu_custom_call.1} parent=5 // pred_fallthru
        _
    $region6: #{tpu_custom_call.1} parent=1 // loop_footer
      %s24 = sadd.s32 1, %s20
    $region7: #{tpu_custom_call.1} parent=1 // loop_footer_branch
      %19 = sbr.rel target = $region3
    $region8: #{tpu_custom_call.1} parent=1 // loop_exit
      _
    %1509 = vsyncpa [#allocation6], 1
    %s1510 = scalar_lea.sflag [#allocation6], 1
    %1511 = vsyncpa %s1510, 1
    %1512 = vsyncpa [#allocation8], 1
    %s1513 = scalar_lea.sflag [#allocation8], 1
    %1514 = vsyncpa %s1513, 1

</llo_original>
